<compile_context>
chip_gen: v6e
topology: v6e:2x2x1
jax: 0.10.0
libtpu: 0.0.40
codegen_flags: <defaults>
</compile_context>

<pallas_src>
import functools

import jax
import jax.numpy as jnp
import numpy as np
from jax import lax
from jax.experimental import pallas as pl
from jax.experimental.pallas import tpu as pltpu

LANE = 128   # output-channel tile (lane dim) -> lane-dense stores / MXU columns
SUB = 16     # bf16 packs 16 rows per sublane group -> pad input channels to 16


def _round_up(x, m):
    return (x + m - 1) // m * m


# ---------------- Pallas kernels ----------------

def _conv1_bn_relu_kernel(x_ref, w_ref, b_ref, o_ref, *, stride, ho, wo):
    """conv1 (3x3/stride) + folded-BN bias + ReLU, written into a zero-bordered buffer.

    x_ref: (1, s*s, Hs, Ws, Ci)   stride-parity-split, zero-padded input (bf16)
    w_ref: (9*Ci, Ct)             conv weights, taps stacked along K, BN scale folded (bf16)
    b_ref: (1, Ct)                folded BN bias (f32)
    o_ref: (1, ho+2, wo+2, Ct)    output tile with a 1-px zero border (bf16)
    """
    x = x_ref[...]
    wins = []
    for t in range(9):                       # static unroll over the 9 taps
        kh, kw = t // 3, t % 3
        p = (kh % stride) * stride + (kw % stride)
        oh, ow = kh // stride, kw // stride
        wins.append(x[0, p, oh:oh + ho, ow:ow + wo, :])     # (ho, wo, Ci) static slice
    # concat taps along channels -> single deep-K matmul; flatten once.
    lhs = jnp.concatenate(wins, axis=-1).reshape(ho * wo, -1)        # (M, 9*Ci)
    acc = jnp.dot(lhs, w_ref[...], preferred_element_type=jnp.float32)
    y = jnp.maximum(acc + b_ref[...], 0.0)
    o_ref[...] = jnp.zeros(o_ref.shape, o_ref.dtype)                 # zero border
    o_ref[0, 1:1 + ho, 1:1 + wo, :] = y.reshape(ho, wo, -1).astype(o_ref.dtype)


def _conv2_proj_add_relu_kernel(y_ref, x_ref, w_ref, wsc_ref, b_ref, o_ref,
                                *, ho, wo, p_off):
    """conv2 (3x3/1) + BN2, fused with the projection shortcut (1x1/s + BN), add, ReLU.

    y_ref:   (1, ho+2, wo+2, Cp)  conv1 output, zero border written by kernel A (bf16)
    x_ref:   (1, 1, Hs, Ws, Ci)   the parity plane of the block input feeding the shortcut (bf16)
    w_ref:   (9*Cp, Ct)           conv2 weights, taps stacked along K, BN2 scale folded (bf16)
    wsc_ref: (Ci, Ct)             shortcut weights, BN_sc scale folded (bf16)
    b_ref:   (1, Ct)              combined BN2 + BN_sc bias (f32)
    o_ref:   (1, ho, wo, Ct)      final block output tile (bf16)
    """
    y = y_ref[...]
    wins = [y[0, kh:kh + ho, kw:kw + wo, :] for kh in range(3) for kw in range(3)]
    lhs = jnp.concatenate(wins, axis=-1).reshape(ho * wo, -1)        # (M, 9*Cp)
    acc = jnp.dot(lhs, w_ref[...], preferred_element_type=jnp.float32)
    r = x_ref[0, 0, p_off:p_off + ho, p_off:p_off + wo, :].reshape(ho * wo, -1)
    acc = acc + jnp.dot(r, wsc_ref[...], preferred_element_type=jnp.float32)
    out = jnp.maximum(acc + b_ref[...], 0.0)
    o_ref[...] = out.reshape(ho, wo, -1)[None].astype(o_ref.dtype)


def _conv2_ident_add_relu_kernel(y_ref, x_ref, w_ref, b_ref, o_ref, *, ho, wo, p_off):
    """conv2 (3x3/1) + BN2, fused with the identity shortcut, add, ReLU."""
    y = y_ref[...]
    wins = [y[0, kh:kh + ho, kw:kw + wo, :] for kh in range(3) for kw in range(3)]
    lhs = jnp.concatenate(wins, axis=-1).reshape(ho * wo, -1)
    acc = jnp.dot(lhs, w_ref[...], preferred_element_type=jnp.float32)
    r = x_ref[0, 0, p_off:p_off + ho, p_off:p_off + wo, :].reshape(ho * wo, -1)
    acc = acc + r.astype(jnp.float32)
    out = jnp.maximum(acc + b_ref[...], 0.0)
    o_ref[...] = out.reshape(ho, wo, -1)[None].astype(o_ref.dtype)


# ---------------- pallas_call wrappers ----------------

def _grid_order(n_batch, n_ctile, batch_outer):
    # Pallas skips a block DMA when its block index repeats between consecutive grid steps,
    # so keep the LARGER operand's index constant along the inner axis.
    if batch_outer:
        return (n_batch, n_ctile), (lambda i, j: i), (lambda i, j: j)
    return (n_ctile, n_batch), (lambda i, j: j), (lambda i, j: i)


def conv1_bn_relu(xs, w1, bias, stride, ho, wo):
    """xs: (N, s*s, Hs, Ws, Ci) bf16 -> (N, ho+2, wo+2, Cp) bf16 (zero border) via kernel A."""
    n, ss, hs, ws, ci = xs.shape
    kdim, co_p = w1.shape
    nct = co_p // LANE
    hp2, wp2 = ho + 2, wo + 2

    act_bytes = ss * hs * ws * ci * 2          # per-batch activation block
    wgt_bytes = kdim * LANE * 2                # per-channel-tile weight slab
    grid, b_of, c_of = _grid_order(n, nct, batch_outer=act_bytes >= wgt_bytes)

    kernel = functools.partial(_conv1_bn_relu_kernel, stride=stride, ho=ho, wo=wo)
    cost = pl.CostEstimate(
        flops=2 * n * ho * wo * kdim * co_p,
        transcendentals=0,
        bytes_accessed=n * act_bytes + nct * wgt_bytes + co_p * 4 + n * hp2 * wp2 * co_p * 2)

    return pl.pallas_call(
        kernel,
        out_shape=jax.ShapeDtypeStruct((n, hp2, wp2, co_p), jnp.bfloat16),
        grid=grid,
        in_specs=[
            pl.BlockSpec((1, ss, hs, ws, ci), lambda i, j: (b_of(i, j), 0, 0, 0, 0)),
            pl.BlockSpec((kdim, LANE), lambda i, j: (0, c_of(i, j))),
            pl.BlockSpec((1, LANE), lambda i, j: (0, c_of(i, j))),
        ],
        out_specs=pl.BlockSpec((1, hp2, wp2, LANE),
                               lambda i, j: (b_of(i, j), 0, 0, c_of(i, j))),
        compiler_params=pltpu.CompilerParams(
            dimension_semantics=("parallel", "parallel"),
            vmem_limit_bytes=64 * 1024 * 1024),
        cost_estimate=cost,
    )(xs, w1, bias)


def conv2_bn_shortcut_add_relu(y1p, xs, w2, wsc, bias, stride, ho, wo, project):
    """Kernel B: conv2 + BN2 + shortcut + add + ReLU.  Returns (N, ho, wo, Cp) bf16."""
    n, hp2, wp2, cp = y1p.shape
    _, ss, hs, ws, ci = xs.shape
    kdim, co_p = w2.shape
    nct = co_p // LANE
    # parity plane / in-plane offset of xs that realizes x[:, ::s, ::s] (or x for identity)
    p_sc = (1 % stride) * stride + (1 % stride)
    p_off = 1 // stride

    act_bytes = hp2 * wp2 * cp * 2 + hs * ws * (ci if project else LANE) * 2
    wgt_bytes = kdim * LANE * 2 + (ci * LANE * 2 if project else 0)
    grid, b_of, c_of = _grid_order(n, nct, batch_outer=act_bytes >= wgt_bytes)

    flops = 2 * n * ho * wo * kdim * co_p + (2 * n * ho * wo * ci * co_p if project else 0)
    cost = pl.CostEstimate(
        flops=flops, transcendentals=0,
        bytes_accessed=n * act_bytes + nct * wgt_bytes + co_p * 4 + n * ho * wo * co_p * 2)

    y_spec = pl.BlockSpec((1, hp2, wp2, cp), lambda i, j: (b_of(i, j), 0, 0, 0))
    w_spec = pl.BlockSpec((kdim, LANE), lambda i, j: (0, c_of(i, j)))
    b_spec = pl.BlockSpec((1, LANE), lambda i, j: (0, c_of(i, j)))
    out_spec = pl.BlockSpec((1, ho, wo, LANE), lambda i, j: (b_of(i, j), 0, 0, c_of(i, j)))

    if project:
        kernel = functools.partial(_conv2_proj_add_relu_kernel, ho=ho, wo=wo, p_off=p_off)
        x_spec = pl.BlockSpec((1, 1, hs, ws, ci),
                              lambda i, j: (b_of(i, j), p_sc, 0, 0, 0))
        in_specs = [y_spec, x_spec, w_spec,
                    pl.BlockSpec((ci, LANE), lambda i, j: (0, c_of(i, j))), b_spec]
        args = (y1p, xs, w2, wsc, bias)
    else:
        kernel = functools.partial(_conv2_ident_add_relu_kernel, ho=ho, wo=wo, p_off=p_off)
        x_spec = pl.BlockSpec((1, 1, hs, ws, LANE),
                              lambda i, j: (b_of(i, j), p_sc, 0, 0, c_of(i, j)))
        in_specs = [y_spec, x_spec, w_spec, b_spec]
        args = (y1p, xs, w2, bias)

    return pl.pallas_call(
        kernel,
        out_shape=jax.ShapeDtypeStruct((n, ho, wo, co_p), jnp.bfloat16),
        grid=grid,
        in_specs=in_specs,
        out_specs=out_spec,
        compiler_params=pltpu.CompilerParams(
            dimension_semantics=("parallel", "parallel"),
            vmem_limit_bytes=64 * 1024 * 1024),
        cost_estimate=cost,
    )(*args)


# ---------------- parameter prep (BN fold, padding) ----------------

def fold_bn(gamma, beta, mean, var, eps=1e-5):
    scale = (gamma / jnp.sqrt(var + eps)).astype(jnp.float32)
    bias = (beta - mean * scale).astype(jnp.float32)
    return scale, bias


def prep_w3x3(w, scale, ci_p, co_p):
    # (out, in, 3, 3) -> (9*ci_p, co_p) bf16: taps stacked along K (t = kh*3+kw), BN scale folded.
    assert w.shape[2:] == (3, 3), "kernel assumes 3x3 / pad-1 convolutions"
    out_c, in_c = w.shape[0], w.shape[1]
    wm = jnp.transpose(w, (2, 3, 1, 0)).reshape(9, in_c, out_c) * scale[None, None, :]
    wm = jnp.pad(wm, ((0, 0), (0, ci_p - in_c), (0, co_p - out_c)))
    return wm.reshape(9 * ci_p, co_p).astype(jnp.bfloat16)


def prep_w1x1(w, scale, ci_p, co_p):
    assert w.shape[2:] == (1, 1)
    out_c, in_c = w.shape[0], w.shape[1]
    wm = jnp.transpose(w[:, :, 0, 0], (1, 0)) * scale[None, :]
    wm = jnp.pad(wm, ((0, ci_p - in_c), (0, co_p - out_c)))
    return wm.astype(jnp.bfloat16)


def prep_bias(b, co_p):
    return jnp.pad(b, (0, co_p - b.shape[0]))[None, :].astype(jnp.float32)


def _parity_split(xp, s):
    # (N, Hp, Wp, C) with Hp % s == Wp % s == 0  ->  (N, s*s, Hp//s, Wp//s, C)
    # so every (kh, kw) conv tap becomes a static, contiguous slice inside the kernel.
    n, hp, wp, c = xp.shape
    xs = xp.reshape(n, hp // s, s, wp // s, s, c)
    xs = jnp.transpose(xs, (0, 2, 4, 1, 3, 5))
    return xs.reshape(n, s * s, hp // s, wp // s, c)


# ---------------- forward ----------------

@functools.partial(jax.jit, static_argnames=("stride",))
def residual_block_forward(x_nchw, params, stride):
    # TODO(synk): a full network should keep NHWC end-to-end; the NCHW<->NHWC transposes
    #             only exist to keep the PyTorch interface at the block boundary.
    x = jnp.transpose(x_nchw, (0, 2, 3, 1)).astype(jnp.float32)      # NCHW -> NHWC
    n, h, w, in_c = x.shape
    out_c = params["w1"].shape[0]
    project = (stride != 1) or (in_c != out_c)
    co_p = _round_up(out_c, LANE)                 # lane-dense (128-multiple) out channels
    # identity path: pad input channels straight to co_p so the SAME parity-split tensor
    # doubles as the residual feed for kernel B (no second HBM copy of x).
    ci_p = _round_up(in_c, SUB) if project else co_p
    ho = (h + 2 - 3) // stride + 1
    wo = (w + 2 - 3) // stride + 1

    s1, b1 = fold_bn(*params["bn1"])
    s2, b2 = fold_bn(*params["bn2"])
    w1 = prep_w3x3(params["w1"], s1, ci_p, co_p)
    w2 = prep_w3x3(params["w2"], s2, co_p, co_p)

    # single pad + cast + stride-parity reshuffle; feeds conv1 AND the shortcut.
    eh = (-(h + 2)) % stride
    ew = (-(w + 2)) % stride
    xp = jnp.pad(x, ((0, 0), (1, 1 + eh), (1, 1 + ew), (0, ci_p - in_c))).astype(jnp.bfloat16)
    xs = _parity_split(xp, stride)                # (N, s*s, Hs, Ws, ci_p)

    # kernel A: conv1 + bn1 + relu -> zero-bordered (ho+2, wo+2, co_p) buffer (bf16)
    y1p = conv1_bn_relu(xs, w1, prep_bias(b1, co_p), stride, ho, wo)

    # kernel B: conv2 + bn2 + shortcut + add + relu (single fused kernel, bf16 out)
    if project:
        ssc, bsc = fold_bn(*params["bn_sc"])
        wsc = prep_w1x1(params["w_sc"], ssc, ci_p, co_p)
        out = conv2_bn_shortcut_add_relu(y1p, xs, w2, wsc, prep_bias(b2 + bsc, co_p),
                                         stride, ho, wo, True)
    else:
        out = conv2_bn_shortcut_add_relu(y1p, xs, w2, None, prep_bias(b2, co_p),
                                         stride, ho, wo, False)

    out = out[..., :out_c].astype(jnp.float32)
    return jnp.transpose(out, (0, 3, 1, 2))       # back to NCHW


# ---------------- pure-JAX reference (sanity check) ----------------

def _conv_ref(x_nhwc, w_oihw, stride, pad):
    w_hwio = jnp.transpose(w_oihw, (2, 3, 1, 0))
    return lax.conv_general_dilated(
        x_nhwc, w_hwio, (stride, stride), [(pad, pad), (pad, pad)],
        dimension_numbers=("NHWC", "HWIO", "NHWC"))


def _bn_ref(y, gamma, beta, mean, var, eps=1e-5):
    return (y - mean) / jnp.sqrt(var + eps) * gamma + beta


def residual_block_reference(x_nchw, params, stride):
    x = jnp.transpose(x_nchw, (0, 2, 3, 1)).astype(jnp.float32)
    in_c = x.shape[-1]
    out_c = params["w1"].shape[0]
    y = _conv_ref(x, params["w1"], stride, 1)
    y = jax.nn.relu(_bn_ref(y, *params["bn1"]))
    y = _conv_ref(y, params["w2"], 1, 1)
    y = _bn_ref(y, *params["bn2"])
    if stride != 1 or in_c != out_c:
        sc = _conv_ref(x, params["w_sc"], stride, 0)
        sc = _bn_ref(sc, *params["bn_sc"])
    else:
        sc = x
    out = jax.nn.relu(y + sc)
    return jnp.transpose(out, (0, 3, 1, 2))


# ---------------- main ----------------

if __name__ == "__main__":
    key = jax.random.PRNGKey(0)

    def make_params(k, in_c, out_c):
        ks = jax.random.split(k, 6)

        def bn(kk):
            k1, k2, k3, k4 = jax.random.split(kk, 4)
            return (jax.random.uniform(k1, (out_c,), minval=0.5, maxval=1.5),
                    jax.random.normal(k2, (out_c,)) * 0.1,
                    jax.random.normal(k3, (out_c,)) * 0.1,
                    jax.random.uniform(k4, (out_c,), minval=0.5, maxval=1.5))

        return {
            "w1": jax.random.normal(ks[0], (out_c, in_c, 3, 3)) * 0.1,
            "bn1": bn(ks[1]),
            "w2": jax.random.normal(ks[2], (out_c, out_c, 3, 3)) * 0.1,
            "bn2": bn(ks[3]),
            "w_sc": jax.random.normal(ks[4], (out_c, in_c, 1, 1)) * 0.1,
            "bn_sc": bn(ks[5]),
        }

    k1, k2, k3, k4 = jax.random.split(key, 4)

    # 1) projection path: ResidualBlock(in_c=4, out_c=8, stride=2)
    N, in_c, out_c, H, W, stride = 2, 4, 8, 16, 16, 2
    params = make_params(k1, in_c, out_c)
    x = jax.random.normal(k2, (N, in_c, H, W), dtype=jnp.float32)
    out = jax.block_until_ready(residual_block_forward(x, params, stride))
    ref = jax.block_until_ready(residual_block_reference(x, params, stride))
    assert out.shape == (N, out_c, H // stride, W // stride), out.shape
    np.testing.assert_allclose(np.asarray(out), np.asarray(ref), rtol=5e-2, atol=5e-2)

    # 2) identity path: ResidualBlock(in_c=8, out_c=8, stride=1)
    N, in_c, out_c, H, W, stride = 2, 8, 8, 8, 8, 1
    params = make_params(k3, in_c, out_c)
    x = jax.random.normal(k4, (N, in_c, H, W), dtype=jnp.float32)
    out = jax.block_until_ready(residual_block_forward(x, params, stride))
    ref = jax.block_until_ready(residual_block_reference(x, params, stride))
    assert out.shape == (N, out_c, H, W), out.shape
    np.testing.assert_allclose(np.asarray(out), np.asarray(ref), rtol=5e-2, atol=5e-2)

    print("KERNEL_OK")
</pallas_src>

<mosaic_0001>
module attributes {stable_mosaic.version = 11 : i64} {
  func.func @_conv1_bn_relu_kernel(%arg0: i32, %arg1: i32, %arg2: memref<1x4x9x9x16xbf16, #tpu.memory_space<vmem>>, %arg3: memref<144x128xbf16, #tpu.memory_space<vmem>>, %arg4: memref<1x128xf32, #tpu.memory_space<vmem>>, %arg5: memref<1x10x10x128xbf16, #tpu.memory_space<vmem>>) attributes {dimension_semantics = [#tpu.dimension_semantics<parallel>, #tpu.dimension_semantics<parallel>], iteration_bounds = array<i64: 1, 2>, scalar_prefetch = 0 : i64, scratch_operands = 0 : i64, tpu.core_type = #tpu.core_type<tc>, window_params = [{transform_indices = @transform_0, window_bounds = array<i64: 1, 4, 9, 9, 16>}, {transform_indices = @transform_1, window_bounds = array<i64: 144, 128>}, {transform_indices = @transform_2, window_bounds = array<i64: 1, 128>}, {transform_indices = @transform_3, window_bounds = array<i64: 1, 10, 10, 128>}]} {
    %c0 = arith.constant 0 : index
    %c0_0 = arith.constant 0 : index
    %c0_1 = arith.constant 0 : index
    %c0_2 = arith.constant 0 : index
    %c0_3 = arith.constant 0 : index
    %0 = vector.load %arg2[%c0, %c0_0, %c0_1, %c0_2, %c0_3] : memref<1x4x9x9x16xbf16, #tpu.memory_space<vmem>>, vector<1x4x9x9x16xbf16>
    %1 = vector.extract_strided_slice %0 {offsets = [0, 0, 0, 0, 0], sizes = [1, 1, 8, 8, 16], strides = [1, 1, 1, 1, 1]} : vector<1x4x9x9x16xbf16> to vector<1x1x8x8x16xbf16>
    %2 = vector.shape_cast %1 : vector<1x1x8x8x16xbf16> to vector<8x8x16xbf16>
    %3 = vector.extract_strided_slice %0 {offsets = [0, 1, 0, 0, 0], sizes = [1, 1, 8, 8, 16], strides = [1, 1, 1, 1, 1]} : vector<1x4x9x9x16xbf16> to vector<1x1x8x8x16xbf16>
    %4 = vector.shape_cast %3 : vector<1x1x8x8x16xbf16> to vector<8x8x16xbf16>
    %5 = vector.extract_strided_slice %0 {offsets = [0, 0, 0, 1, 0], sizes = [1, 1, 8, 8, 16], strides = [1, 1, 1, 1, 1]} : vector<1x4x9x9x16xbf16> to vector<1x1x8x8x16xbf16>
    %6 = vector.shape_cast %5 : vector<1x1x8x8x16xbf16> to vector<8x8x16xbf16>
    %7 = vector.extract_strided_slice %0 {offsets = [0, 2, 0, 0, 0], sizes = [1, 1, 8, 8, 16], strides = [1, 1, 1, 1, 1]} : vector<1x4x9x9x16xbf16> to vector<1x1x8x8x16xbf16>
    %8 = vector.shape_cast %7 : vector<1x1x8x8x16xbf16> to vector<8x8x16xbf16>
    %9 = vector.extract_strided_slice %0 {offsets = [0, 3, 0, 0, 0], sizes = [1, 1, 8, 8, 16], strides = [1, 1, 1, 1, 1]} : vector<1x4x9x9x16xbf16> to vector<1x1x8x8x16xbf16>
    %10 = vector.shape_cast %9 : vector<1x1x8x8x16xbf16> to vector<8x8x16xbf16>
    %11 = vector.extract_strided_slice %0 {offsets = [0, 2, 0, 1, 0], sizes = [1, 1, 8, 8, 16], strides = [1, 1, 1, 1, 1]} : vector<1x4x9x9x16xbf16> to vector<1x1x8x8x16xbf16>
    %12 = vector.shape_cast %11 : vector<1x1x8x8x16xbf16> to vector<8x8x16xbf16>
    %13 = vector.extract_strided_slice %0 {offsets = [0, 0, 1, 0, 0], sizes = [1, 1, 8, 8, 16], strides = [1, 1, 1, 1, 1]} : vector<1x4x9x9x16xbf16> to vector<1x1x8x8x16xbf16>
    %14 = vector.shape_cast %13 : vector<1x1x8x8x16xbf16> to vector<8x8x16xbf16>
    %15 = vector.extract_strided_slice %0 {offsets = [0, 1, 1, 0, 0], sizes = [1, 1, 8, 8, 16], strides = [1, 1, 1, 1, 1]} : vector<1x4x9x9x16xbf16> to vector<1x1x8x8x16xbf16>
    %16 = vector.shape_cast %15 : vector<1x1x8x8x16xbf16> to vector<8x8x16xbf16>
    %17 = vector.extract_strided_slice %0 {offsets = [0, 0, 1, 1, 0], sizes = [1, 1, 8, 8, 16], strides = [1, 1, 1, 1, 1]} : vector<1x4x9x9x16xbf16> to vector<1x1x8x8x16xbf16>
    %18 = vector.shape_cast %17 : vector<1x1x8x8x16xbf16> to vector<8x8x16xbf16>
    %19 = tpu.concatenate %2, %4, %6, %8, %10, %12, %14, %16, %18 in 2 : vector<8x8x16xbf16>, vector<8x8x16xbf16>, vector<8x8x16xbf16>, vector<8x8x16xbf16>, vector<8x8x16xbf16>, vector<8x8x16xbf16>, vector<8x8x16xbf16>, vector<8x8x16xbf16>, vector<8x8x16xbf16> -> vector<8x8x144xbf16>
    %20 = vector.shape_cast %19 : vector<8x8x144xbf16> to vector<64x144xbf16>
    %c0_4 = arith.constant 0 : index
    %c0_5 = arith.constant 0 : index
    %21 = vector.load %arg3[%c0_4, %c0_5] : memref<144x128xbf16, #tpu.memory_space<vmem>>, vector<144x128xbf16>
    %cst = arith.constant dense<0.000000e+00> : vector<64x128xf32>
    %22 = tpu.matmul %20, %21, %cst {dimension_numbers = #tpu.dot_dimension_numbers<[1], [0], [0], [1], [0, 0, 1, 1], [], []>} : vector<64x144xbf16>, vector<144x128xbf16>, vector<64x128xf32> -> vector<64x128xf32>
    %c0_6 = arith.constant 0 : index
    %c0_7 = arith.constant 0 : index
    %23 = vector.load %arg4[%c0_6, %c0_7] : memref<1x128xf32, #tpu.memory_space<vmem>>, vector<1x128xf32>
    %24 = vector.broadcast %23 : vector<1x128xf32> to vector<64x128xf32>
    %25 = arith.addf %22, %24 : vector<64x128xf32>
    %cst_8 = arith.constant 0.000000e+00 : f32
    %26 = vector.broadcast %cst_8 : f32 to vector<64x128xf32>
    %27 = arith.maximumf %25, %26 : vector<64x128xf32>
    %cst_9 = arith.constant 0.000000e+00 : bf16
    %28 = vector.broadcast %cst_9 : bf16 to vector<1x10x10x128xbf16>
    %c0_10 = arith.constant 0 : index
    %c0_11 = arith.constant 0 : index
    %c0_12 = arith.constant 0 : index
    %c0_13 = arith.constant 0 : index
    %29 = vector.load %arg5[%c0_10, %c0_11, %c0_12, %c0_13] : memref<1x10x10x128xbf16, #tpu.memory_space<vmem>>, vector<1x10x10x128xbf16>
    tpu.vector_store %arg5[%c0_10, %c0_11, %c0_12, %c0_13], %28 {strides = array<i32>} : memref<1x10x10x128xbf16, #tpu.memory_space<vmem>>, vector<1x10x10x128xbf16>,
    %30 = vector.shape_cast %27 : vector<64x128xf32> to vector<8x8x128xf32>
    %31 = arith.truncf %30 : vector<8x8x128xf32> to vector<8x8x128xbf16>
    %c0_14 = arith.constant 0 : index
    %c1 = arith.constant 1 : index
    %c1_15 = arith.constant 1 : index
    %c0_16 = arith.constant 0 : index
    %32 = vector.load %arg5[%c0_14, %c1, %c1_15, %c0_16] : memref<1x10x10x128xbf16, #tpu.memory_space<vmem>>, vector<1x8x8x128xbf16>
    %33 = vector.shape_cast %32 : vector<1x8x8x128xbf16> to vector<8x8x128xbf16>
    %34 = vector.shape_cast %31 : vector<8x8x128xbf16> to vector<1x8x8x128xbf16>
    tpu.vector_store %arg5[%c0_14, %c1, %c1_15, %c0_16], %34 {strides = array<i32>} : memref<1x10x10x128xbf16, #tpu.memory_space<vmem>>, vector<1x8x8x128xbf16>,
    return
  }
  func.func @transform_0(%arg0: i32, %arg1: i32) -> (i32, i32, i32, i32, i32) {
    %c0_i32 = arith.constant 0 : i32
    %c0_i32_0 = arith.constant 0 : i32
    %c0_i32_1 = arith.constant 0 : i32
    %c0_i32_2 = arith.constant 0 : i32
    %c0_i32_3 = arith.constant 0 : i32
    return %arg1, %c0_i32, %c0_i32_0, %c0_i32_1, %c0_i32_2 : i32, i32, i32, i32, i32
  }
  func.func @transform_1(%arg0: i32, %arg1: i32) -> (i32, i32) {
    %c0_i32 = arith.constant 0 : i32
    %c0_i32_0 = arith.constant 0 : i32
    return %c0_i32, %arg0 : i32, i32
  }
  func.func @transform_2(%arg0: i32, %arg1: i32) -> (i32, i32) {
    %c0_i32 = arith.constant 0 : i32
    %c0_i32_0 = arith.constant 0 : i32
    return %c0_i32, %arg0 : i32, i32
  }
  func.func @transform_3(%arg0: i32, %arg1: i32) -> (i32, i32, i32, i32) {
    %c0_i32 = arith.constant 0 : i32
    %c0_i32_0 = arith.constant 0 : i32
    %c0_i32_1 = arith.constant 0 : i32
    return %arg1, %c0_i32, %c0_i32_0, %arg0 : i32, i32, i32, i32
  }
}

module attributes {stable_mosaic.version = 11 : i64} {
  func.func @_conv2_proj_add_relu_kernel(%arg0: i32, %arg1: i32, %arg2: memref<1x10x10x128xbf16, #tpu.memory_space<vmem>>, %arg3: memref<1x1x9x9x16xbf16, #tpu.memory_space<vmem>>, %arg4: memref<1152x128xbf16, #tpu.memory_space<vmem>>, %arg5: memref<16x128xbf16, #tpu.memory_space<vmem>>, %arg6: memref<1x128xf32, #tpu.memory_space<vmem>>, %arg7: memref<1x8x8x128xbf16, #tpu.memory_space<vmem>>) attributes {dimension_semantics = [#tpu.dimension_semantics<parallel>, #tpu.dimension_semantics<parallel>], iteration_bounds = array<i64: 1, 2>, scalar_prefetch = 0 : i64, scratch_operands = 0 : i64, tpu.core_type = #tpu.core_type<tc>, window_params = [{transform_indices = @transform_0, window_bounds = array<i64: 1, 10, 10, 128>}, {transform_indices = @transform_1, window_bounds = array<i64: 1, 1, 9, 9, 16>}, {transform_indices = @transform_2, window_bounds = array<i64: 1152, 128>}, {transform_indices = @transform_3, window_bounds = array<i64: 16, 128>}, {transform_indices = @transform_4, window_bounds = array<i64: 1, 128>}, {transform_indices = @transform_5, window_bounds = array<i64: 1, 8, 8, 128>}]} {
    %c0 = arith.constant 0 : index
    %c0_0 = arith.constant 0 : index
    %c0_1 = arith.constant 0 : index
    %c0_2 = arith.constant 0 : index
    %0 = vector.load %arg2[%c0, %c0_0, %c0_1, %c0_2] : memref<1x10x10x128xbf16, #tpu.memory_space<vmem>>, vector<1x10x10x128xbf16>
    %1 = vector.extract_strided_slice %0 {offsets = [0, 0, 0, 0], sizes = [1, 8, 8, 128], strides = [1, 1, 1, 1]} : vector<1x10x10x128xbf16> to vector<1x8x8x128xbf16>
    %2 = vector.shape_cast %1 : vector<1x8x8x128xbf16> to vector<8x8x128xbf16>
    %3 = vector.extract_strided_slice %0 {offsets = [0, 0, 1, 0], sizes = [1, 8, 8, 128], strides = [1, 1, 1, 1]} : vector<1x10x10x128xbf16> to vector<1x8x8x128xbf16>
    %4 = vector.shape_cast %3 : vector<1x8x8x128xbf16> to vector<8x8x128xbf16>
    %5 = vector.extract_strided_slice %0 {offsets = [0, 0, 2, 0], sizes = [1, 8, 8, 128], strides = [1, 1, 1, 1]} : vector<1x10x10x128xbf16> to vector<1x8x8x128xbf16>
    %6 = vector.shape_cast %5 : vector<1x8x8x128xbf16> to vector<8x8x128xbf16>
    %7 = vector.extract_strided_slice %0 {offsets = [0, 1, 0, 0], sizes = [1, 8, 8, 128], strides = [1, 1, 1, 1]} : vector<1x10x10x128xbf16> to vector<1x8x8x128xbf16>
    %8 = vector.shape_cast %7 : vector<1x8x8x128xbf16> to vector<8x8x128xbf16>
    %9 = vector.extract_strided_slice %0 {offsets = [0, 1, 1, 0], sizes = [1, 8, 8, 128], strides = [1, 1, 1, 1]} : vector<1x10x10x128xbf16> to vector<1x8x8x128xbf16>
    %10 = vector.shape_cast %9 : vector<1x8x8x128xbf16> to vector<8x8x128xbf16>
    %11 = vector.extract_strided_slice %0 {offsets = [0, 1, 2, 0], sizes = [1, 8, 8, 128], strides = [1, 1, 1, 1]} : vector<1x10x10x128xbf16> to vector<1x8x8x128xbf16>
    %12 = vector.shape_cast %11 : vector<1x8x8x128xbf16> to vector<8x8x128xbf16>
    %13 = vector.extract_strided_slice %0 {offsets = [0, 2, 0, 0], sizes = [1, 8, 8, 128], strides = [1, 1, 1, 1]} : vector<1x10x10x128xbf16> to vector<1x8x8x128xbf16>
    %14 = vector.shape_cast %13 : vector<1x8x8x128xbf16> to vector<8x8x128xbf16>
    %15 = vector.extract_strided_slice %0 {offsets = [0, 2, 1, 0], sizes = [1, 8, 8, 128], strides = [1, 1, 1, 1]} : vector<1x10x10x128xbf16> to vector<1x8x8x128xbf16>
    %16 = vector.shape_cast %15 : vector<1x8x8x128xbf16> to vector<8x8x128xbf16>
    %17 = vector.extract_strided_slice %0 {offsets = [0, 2, 2, 0], sizes = [1, 8, 8, 128], strides = [1, 1, 1, 1]} : vector<1x10x10x128xbf16> to vector<1x8x8x128xbf16>
    %18 = vector.shape_cast %17 : vector<1x8x8x128xbf16> to vector<8x8x128xbf16>
    %19 = tpu.concatenate %2, %4, %6, %8, %10, %12, %14, %16, %18 in 2 : vector<8x8x128xbf16>, vector<8x8x128xbf16>, vector<8x8x128xbf16>, vector<8x8x128xbf16>, vector<8x8x128xbf16>, vector<8x8x128xbf16>, vector<8x8x128xbf16>, vector<8x8x128xbf16>, vector<8x8x128xbf16> -> vector<8x8x1152xbf16>
    %20 = vector.shape_cast %19 : vector<8x8x1152xbf16> to vector<64x1152xbf16>
    %c0_3 = arith.constant 0 : index
    %c0_4 = arith.constant 0 : index
    %21 = vector.load %arg4[%c0_3, %c0_4] : memref<1152x128xbf16, #tpu.memory_space<vmem>>, vector<1152x128xbf16>
    %cst = arith.constant dense<0.000000e+00> : vector<64x128xf32>
    %22 = tpu.matmul %20, %21, %cst {dimension_numbers = #tpu.dot_dimension_numbers<[1], [0], [0], [1], [0, 0, 1, 1], [], []>} : vector<64x1152xbf16>, vector<1152x128xbf16>, vector<64x128xf32> -> vector<64x128xf32>
    %c0_5 = arith.constant 0 : index
    %c0_6 = arith.constant 0 : index
    %c0_7 = arith.constant 0 : index
    %c0_8 = arith.constant 0 : index
    %c0_9 = arith.constant 0 : index
    %23 = vector.load %arg3[%c0_5, %c0_6, %c0_7, %c0_8, %c0_9] : memref<1x1x9x9x16xbf16, #tpu.memory_space<vmem>>, vector<1x1x8x8x16xbf16>
    %24 = vector.shape_cast %23 : vector<1x1x8x8x16xbf16> to vector<8x8x16xbf16>
    %25 = vector.shape_cast %24 : vector<8x8x16xbf16> to vector<64x16xbf16>
    %c0_10 = arith.constant 0 : index
    %c0_11 = arith.constant 0 : index
    %26 = vector.load %arg5[%c0_10, %c0_11] : memref<16x128xbf16, #tpu.memory_space<vmem>>, vector<16x128xbf16>
    %cst_12 = arith.constant dense<0.000000e+00> : vector<64x128xf32>
    %27 = tpu.matmul %25, %26, %cst_12 {dimension_numbers = #tpu.dot_dimension_numbers<[1], [0], [0], [1], [0, 0, 1, 1], [], []>} : vector<64x16xbf16>, vector<16x128xbf16>, vector<64x128xf32> -> vector<64x128xf32>
    %28 = arith.addf %22, %27 : vector<64x128xf32>
    %c0_13 = arith.constant 0 : index
    %c0_14 = arith.constant 0 : index
    %29 = vector.load %arg6[%c0_13, %c0_14] : memref<1x128xf32, #tpu.memory_space<vmem>>, vector<1x128xf32>
    %30 = vector.broadcast %29 : vector<1x128xf32> to vector<64x128xf32>
    %31 = arith.addf %28, %30 : vector<64x128xf32>
    %cst_15 = arith.constant 0.000000e+00 : f32
    %32 = vector.broadcast %cst_15 : f32 to vector<64x128xf32>
    %33 = arith.maximumf %31, %32 : vector<64x128xf32>
    %34 = vector.shape_cast %33 : vector<64x128xf32> to vector<8x8x128xf32>
    %35 = vector.shape_cast %34 : vector<8x8x128xf32> to vector<1x8x8x128xf32>
    %36 = arith.truncf %35 : vector<1x8x8x128xf32> to vector<1x8x8x128xbf16>
    %c0_16 = arith.constant 0 : index
    %c0_17 = arith.constant 0 : index
    %c0_18 = arith.constant 0 : index
    %c0_19 = arith.constant 0 : index
    %37 = vector.load %arg7[%c0_16, %c0_17, %c0_18, %c0_19] : memref<1x8x8x128xbf16, #tpu.memory_space<vmem>>, vector<1x8x8x128xbf16>
    tpu.vector_store %arg7[%c0_16, %c0_17, %c0_18, %c0_19], %36 {strides = array<i32>} : memref<1x8x8x128xbf16, #tpu.memory_space<vmem>>, vector<1x8x8x128xbf16>,
    return
  }
  func.func @transform_0(%arg0: i32, %arg1: i32) -> (i32, i32, i32, i32) {
    %c0_i32 = arith.constant 0 : i32
    %c0_i32_0 = arith.constant 0 : i32
    %c0_i32_1 = arith.constant 0 : i32
    %c0_i32_2 = arith.constant 0 : i32
    return %arg1, %c0_i32, %c0_i32_0, %c0_i32_1 : i32, i32, i32, i32
  }
  func.func @transform_1(%arg0: i32, %arg1: i32) -> (i32, i32, i32, i32, i32) {
    %c3_i32 = arith.constant 3 : i32
    %c0_i32 = arith.constant 0 : i32
    %c0_i32_0 = arith.constant 0 : i32
    %c0_i32_1 = arith.constant 0 : i32
    %c0_i32_2 = arith.constant 0 : i32
    return %arg1, %c3_i32, %c0_i32, %c0_i32_0, %c0_i32_1 : i32, i32, i32, i32, i32
  }
  func.func @transform_2(%arg0: i32, %arg1: i32) -> (i32, i32) {
    %c0_i32 = arith.constant 0 : i32
    %c0_i32_0 = arith.constant 0 : i32
    return %c0_i32, %arg0 : i32, i32
  }
  func.func @transform_3(%arg0: i32, %arg1: i32) -> (i32, i32) {
    %c0_i32 = arith.constant 0 : i32
    %c0_i32_0 = arith.constant 0 : i32
    return %c0_i32, %arg0 : i32, i32
  }
  func.func @transform_4(%arg0: i32, %arg1: i32) -> (i32, i32) {
    %c0_i32 = arith.constant 0 : i32
    %c0_i32_0 = arith.constant 0 : i32
    return %c0_i32, %arg0 : i32, i32
  }
  func.func @transform_5(%arg0: i32, %arg1: i32) -> (i32, i32, i32, i32) {
    %c0_i32 = arith.constant 0 : i32
    %c0_i32_0 = arith.constant 0 : i32
    %c0_i32_1 = arith.constant 0 : i32
    return %arg1, %c0_i32, %c0_i32_0, %arg0 : i32, i32, i32, i32
  }
}

</mosaic_0001>

<llo_original>
// kernel: residual_block_forward.2
$region0: #{residual_block_forward.2}
  #allocation0 [shape = 'u32[]', space=smem, size = 0x4, offset = 0x4, fixed_abs, tag = 'smem constant byte address 0x4 - core index']
  #allocation1 [shape = 'u32[144,128]{1,0:T(1,128)}', space=vmem, size = 0x12000, scoped, tag = 'internal scratch']
  %s0 = inlined_call_operand.vmem [shape: bf16[2,4,9,9,16], index: 0, kind: input, shape index: {}]
  %s1 = inlined_call_operand.vmem [shape: bf16[144,128], index: 1, kind: input, shape index: {}]
  %s2 = inlined_call_operand.vmem [shape: f32[1,128], index: 2, kind: input, shape index: {}]
  %s3 = inlined_call_operand.vmem [shape: bf16[2,10,10,128], index: 3, kind: output, shape index: {}]
  %s4 = sld [smem:[#allocation0]]
  $region45: #{residual_block_forward.2} parent=0
    _
  %s6 = ssub.s32 1, %s4
  %s7 = scalar_select 0, %s6, %s4
  loop: start=0, step=1, limit=4
  $region2: #{residual_block_forward.2} parent=0 // loop_pre_header
    _
  $region3: #{residual_block_forward.2} parent=0 // loop_header
    %s9 = sphi 0, %s13
    %p10 = scmp.ge.s32.totalorder %s9, 4
    %s16 = sphi 0, %s28
    %s17 = sphi 0, %s24
    %s18 = sphi 0, %s16
    %s19 = sphi 0, %s17
    %s20 = sphi 0, %s18
    %s21 = sphi 0, %s19
    %s31 = sphi 0, %s33
    %s34 = sphi 0, %s31
    %s35 = sphi 0, %s34
    %s51 = sphi 0, %s35
    %s57 = sphi 0, %s59
    %s60 = sphi 0, %s57
    %s61 = sphi 0, %s60
    %s77 = sphi 0, %s61
    %s83 = sphi 0, %s85
    %s86 = sphi 0, %s83
    %s87 = sphi 0, %s86
    %s103 = sphi 0, %s87
    %s111 = sphi 0, %s113
    %s114 = sphi 0, %s111
    %s115 = sphi 0, %s114
    %s131 = sphi 0, %s115
  $region4: #{residual_block_forward.2} parent=0 // loop_header_branch
    %12 = sbr.rel (%p10) target = $region8
  $region5: #{residual_block_forward.2} parent=0 // loop_body
    %s14 = ssub.s32 %s9, 1
    %s15 = ssub.s32 %s9, 2
    %s22 = sadd.s32 1, %s17
    %p23 = scmp.ge.s32.totalorder %s22, 2
    %s24 = scalar_select %p23, 0, %s22
    %s25 = sadd.s32 1, %s16
    %s26 = scalar_select %p23, %s25, %s16
    %p27 = scmp.ge.s32.totalorder %s26, 1
    %s28 = scalar_select %p27, 0, %s26
    %s29 = ssub.s32 %s17, %s24
    %p30 = scmp.eq.s32.totalorder %s29, 0
    %s32 = sadd.s32 %s31, 1
    %s33 = scalar_select %p30, %s31, %s32
    %p36 = pneg %p30
    %p37 = scmp.eq.s32.totalorder %s9, 1
    %p38 = por %p36, %p37
    %p39 = scmp.ne.s32.totalorder %s31, %s34
    %p40 = scmp.eq.s32.totalorder %s9, 0
    %p41 = por %p39, %p40
    %p42 = scmp.ne.s32.totalorder %s31, %s34
    %p43 = scmp.eq.s32.totalorder %s14, 1
    %p44 = por %p42, %p43
    %p45 = scmp.ne.s32.totalorder %s34, %s35
    %p46 = scmp.eq.s32.totalorder %s14, 0
    %p47 = por %p45, %p46
    %p48 = scmp.ne.s32.totalorder %s34, %s35
    %p49 = scmp.eq.s32.totalorder %s15, 1
    %p50 = por %p48, %p49
    %p52 = scmp.ne.s32.totalorder %s35, %s51
    %p53 = scmp.eq.s32.totalorder %s15, 0
    %p54 = por %p52, %p53
    %s55 = ssub.s32 %s16, %s28
    %p56 = scmp.eq.s32.totalorder %s55, 0
    %s58 = sadd.s32 %s57, 1
    %s59 = scalar_select %p56, %s57, %s58
    %p62 = pneg %p56
    %p63 = scmp.eq.s32.totalorder %s9, 1
    %p64 = por %p62, %p63
    %p65 = scmp.ne.s32.totalorder %s57, %s60
    %p66 = scmp.eq.s32.totalorder %s9, 0
    %p67 = por %p65, %p66
    %p68 = scmp.ne.s32.totalorder %s57, %s60
    %p69 = scmp.eq.s32.totalorder %s14, 1
    %p70 = por %p68, %p69
    %p71 = scmp.ne.s32.totalorder %s60, %s61
    %p72 = scmp.eq.s32.totalorder %s14, 0
    %p73 = por %p71, %p72
    %p74 = scmp.ne.s32.totalorder %s60, %s61
    %p75 = scmp.eq.s32.totalorder %s15, 1
    %p76 = por %p74, %p75
    %p78 = scmp.ne.s32.totalorder %s61, %s77
    %p79 = scmp.eq.s32.totalorder %s15, 0
    %p80 = por %p78, %p79
    %s81 = ssub.s32 %s16, %s28
    %p82 = scmp.eq.s32.totalorder %s81, 0
    %s84 = sadd.s32 %s83, 1
    %s85 = scalar_select %p82, %s83, %s84
    %p88 = pneg %p82
    %p89 = scmp.eq.s32.totalorder %s9, 1
    %p90 = por %p88, %p89
    %p91 = scmp.ne.s32.totalorder %s83, %s86
    %p92 = scmp.eq.s32.totalorder %s9, 0
    %p93 = por %p91, %p92
    %p94 = scmp.ne.s32.totalorder %s83, %s86
    %p95 = scmp.eq.s32.totalorder %s14, 1
    %p96 = por %p94, %p95
    %p97 = scmp.ne.s32.totalorder %s86, %s87
    %p98 = scmp.eq.s32.totalorder %s14, 0
    %p99 = por %p97, %p98
    %p100 = scmp.ne.s32.totalorder %s86, %s87
    %p101 = scmp.eq.s32.totalorder %s15, 1
    %p102 = por %p100, %p101
    %p104 = scmp.ne.s32.totalorder %s87, %s103
    %p105 = scmp.eq.s32.totalorder %s15, 0
    %p106 = por %p104, %p105
    %s107 = ssub.s32 %s17, %s24
    %s108 = ssub.s32 %s16, %s28
    %s109 = sor.u32 %s107, %s108
    %p110 = scmp.eq.s32.totalorder %s109, 0
    %s112 = sadd.s32 %s111, 1
    %s113 = scalar_select %p110, %s111, %s112
    %p116 = pneg %p110
    %p117 = scmp.eq.s32.totalorder %s9, 1
    %p118 = por %p116, %p117
    %p119 = scmp.ne.s32.totalorder %s111, %s114
    %p120 = scmp.eq.s32.totalorder %s9, 0
    %p121 = por %p119, %p120
    %p122 = scmp.ne.s32.totalorder %s111, %s114
    %p123 = scmp.eq.s32.totalorder %s14, 1
    %p124 = por %p122, %p123
    %p125 = scmp.ne.s32.totalorder %s114, %s115
    %p126 = scmp.eq.s32.totalorder %s14, 0
    %p127 = por %p125, %p126
    %p128 = scmp.ne.s32.totalorder %s114, %s115
    %p129 = scmp.eq.s32.totalorder %s15, 1
    %p130 = por %p128, %p129
    %p132 = scmp.ne.s32.totalorder %s115, %s131
    %p133 = scmp.eq.s32.totalorder %s15, 0
    %p134 = por %p132, %p133
    %p135 = scmp.le.s32.totalorder 1, %s9
    %p136 = scmp.lt.s32.totalorder %s9, 3
    %p137 = pnand %p135, %p136
    %p138 = pneg %p137
    // Predicated region
    $region9: #{residual_block_forward.2} parent=5 // pred_check
      _
    $region10: #{residual_block_forward.2} parent=5 // pred_check_branch
      %140 = sbr.rel (%p137) target = $region12
    $region11: #{residual_block_forward.2} parent=5 // pred_region
      %s141 = ssub.s32 %s9, 1
      // Predicated region
      $region13: #{residual_block_forward.2} parent=11 // pred_check
        %p142 = pneg %p73
      $region14: #{residual_block_forward.2} parent=11 // pred_check_branch
        %144 = sbr.rel (%p142) target = $region16
      $region15: #{residual_block_forward.2} parent=11 // pred_region
        %p145 = scmp.lt.s32.totalorder %s18, 0
        %s146 = scalar_select %p145, %s18, 0
        %s147 = smul.addr %s146, 4
        %s148 = scalar_lea.vmem %s1, %s147
      $region16: #{residual_block_forward.2} parent=11 // pred_fallthru
        _
      // Predicated region
      $region17: #{residual_block_forward.2} parent=11 // pred_check
        %p149 = pneg %p99
      $region18: #{residual_block_forward.2} parent=11 // pred_check_branch
        %151 = sbr.rel (%p149) target = $region20
      $region19: #{residual_block_forward.2} parent=11 // pred_region
        %p152 = scmp.lt.s32.totalorder %s18, 0
        %s153 = scalar_select %p152, %s18, 0
        %s154 = scalar_lea.vmem %s2, %s153
      $region20: #{residual_block_forward.2} parent=11 // pred_fallthru
        _
    $region12: #{residual_block_forward.2} parent=5 // pred_fallthru
      _
    %p155 = scmp.lt.s32.totalorder %s9, 2
    // Predicated region
    $region21: #{residual_block_forward.2} parent=5 // pred_check
      %p156 = pneg %p155
    $region22: #{residual_block_forward.2} parent=5 // pred_check_branch
      %158 = sbr.rel (%p156) target = $region24
    $region23: #{residual_block_forward.2} parent=5 // pred_region
      // Predicated region
      $region25: #{residual_block_forward.2} parent=23 // pred_check
        %p159 = pneg %p41
      $region26: #{residual_block_forward.2} parent=23 // pred_check_branch
        %161 = sbr.rel (%p159) target = $region28
      $region27: #{residual_block_forward.2} parent=23 // pred_region
        %p162 = scmp.lt.s32.totalorder %s17, 1
        %s163 = scalar_select %p162, %s17, 1
        %s164 = smul.addr %s163, 72
        %s165 = smul.addr %s164, 4
        %s166 = scalar_lea.vmem %s0, %s165
      $region28: #{residual_block_forward.2} parent=23 // pred_fallthru
        _
    $region24: #{residual_block_forward.2} parent=5 // pred_fallthru
      _
    %p167 = scmp.le.s32.totalorder 1, %s9
    %p168 = scmp.lt.s32.totalorder %s9, 3
    %p169 = pnand %p167, %p168
    %p170 = pneg %p169
    // Predicated region
    $region29: #{residual_block_forward.2} parent=5 // pred_check
      _
    $region30: #{residual_block_forward.2} parent=5 // pred_check_branch
      %172 = sbr.rel (%p169) target = $region32
    $region31: #{residual_block_forward.2} parent=5 // pred_region
      %s173 = ssub.s32 %s9, 1
      %p174 = scmp.lt.s32.totalorder %s19, 1
      %s175 = scalar_select %p174, %s19, 1
      %s176 = smul.addr %s175, 72
      %s177 = smul.addr %s176, 4
      %s178 = scalar_lea.vmem %s0, %s177
      %p179 = pneg %p47
      %p180 = pneg %p44
      %p181 = scmp.lt.s32.totalorder %s18, 0
      %s182 = scalar_select %p181, %s18, 0
      %s183 = smul.addr %s182, 4
      %s184 = scalar_lea.vmem %s1, %s183
      %p185 = pneg %p73
      %p186 = pneg %p70
      %p187 = scmp.lt.s32.totalorder %s18, 0
      %s188 = scalar_select %p187, %s18, 0
      %s189 = scalar_lea.vmem %s2, %s188
      %p190 = pneg %p99
      %p191 = pneg %p96
      %p192 = pneg %p127
      %p193 = pneg %p124
      %p194 = scmp.lt.s32.totalorder %s19, 1
      %s195 = scalar_select %p194, %s19, 1
      %p196 = scmp.lt.s32.totalorder %s18, 0
      %s197 = scalar_select %p196, %s18, 0
      %s198 = smul.addr %s195, 20
      %s199 = sadd.s32 %s197, %s198
      %s200 = smul.addr %s199, 4
      %s201 = scalar_lea.vmem %s3, %s200
      %p202 = scmp.lt.s32.totalorder %s19, 1
      %s203 = scalar_select %p202, %s19, 1
      %s204 = smul.addr %s203, 72
      %s205 = smul.addr %s204, 4
      %s206 = scalar_lea.vmem %s0, %s205
      %p207 = scmp.lt.s32.totalorder %s18, 0
      %s208 = scalar_select %p207, %s18, 0
      %s209 = smul.addr %s208, 4
      %s210 = scalar_lea.vmem %s1, %s209
      %p211 = scmp.lt.s32.totalorder %s18, 0
      %s212 = scalar_select %p211, %s18, 0
      %s213 = scalar_lea.vmem %s2, %s212
      %p214 = scmp.lt.s32.totalorder %s19, 1
      %s215 = scalar_select %p214, %s19, 1
      %p216 = scmp.lt.s32.totalorder %s18, 0
      %s217 = scalar_select %p216, %s18, 0
      %s218 = smul.addr %s215, 20
      %s219 = sadd.s32 %s217, %s218
      %s220 = smul.addr %s219, 4
      %s221 = scalar_lea.vmem %s3, %s220
      %v223 = vld [vmem:[%s206] sm:$0xf]
      %v224 = vld [vmem:[%s206 + $0x4] sm:$0x1]
      %v225 = vld [vmem:[%s206 + $0x8] sm:$0xf]
      %v226 = vld [vmem:[%s206 + $0xc] sm:$0x1]
      %v227 = vld [vmem:[%s206 + $0x10] sm:$0xf]
      %v228 = vld [vmem:[%s206 + $0x14] sm:$0x1]
      %v229 = vld [vmem:[%s206 + $0x18] sm:$0xf]
      %v230 = vld [vmem:[%s206 + $0x1c] sm:$0x1]
      %v231 = vld [vmem:[%s206 + $0x20] sm:$0xf]
      %v232 = vld [vmem:[%s206 + $0x24] sm:$0x1]
      %v233 = vld [vmem:[%s206 + $0x28] sm:$0xf]
      %v234 = vld [vmem:[%s206 + $0x2c] sm:$0x1]
      %v235 = vld [vmem:[%s206 + $0x30] sm:$0xf]
      %v236 = vld [vmem:[%s206 + $0x34] sm:$0x1]
      %v237 = vld [vmem:[%s206 + $0x38] sm:$0xf]
      %v238 = vld [vmem:[%s206 + $0x3c] sm:$0x1]
      %v239 = vld [vmem:[%s206 + $0x40] sm:$0xf]
      %v240 = vld [vmem:[%s206 + $0x44] sm:$0x1]
      %v241 = vld [vmem:[%s206 + $0x48] sm:$0xf]
      %v242 = vld [vmem:[%s206 + $0x50] sm:$0xf]
      %v243 = vld [vmem:[%s206 + $0x58] sm:$0xf]
      %v244 = vld [vmem:[%s206 + $0x60] sm:$0xf]
      %v245 = vld [vmem:[%s206 + $0x68] sm:$0xf]
      %v246 = vld [vmem:[%s206 + $0x70] sm:$0xf]
      %v247 = vld [vmem:[%s206 + $0x78] sm:$0xf]
      %v248 = vld [vmem:[%s206 + $0x80] sm:$0xf]
      %v249 = vld [vmem:[%s206 + $0x88] sm:$0xf]
      %v250 = vld [vmem:[%s206 + $0x90] sm:$0xf]
      %v251 = vld [vmem:[%s206 + $0x94] sm:$0x1]
      %v252 = vld [vmem:[%s206 + $0x98] sm:$0xf]
      %v253 = vld [vmem:[%s206 + $0x9c] sm:$0x1]
      %v254 = vld [vmem:[%s206 + $0xa0] sm:$0xf]
      %v255 = vld [vmem:[%s206 + $0xa4] sm:$0x1]
      %v256 = vld [vmem:[%s206 + $0xa8] sm:$0xf]
      %v257 = vld [vmem:[%s206 + $0xac] sm:$0x1]
      %v258 = vld [vmem:[%s206 + $0xb0] sm:$0xf]
      %v259 = vld [vmem:[%s206 + $0xb4] sm:$0x1]
      %v260 = vld [vmem:[%s206 + $0xb8] sm:$0xf]
      %v261 = vld [vmem:[%s206 + $0xbc] sm:$0x1]
      %v262 = vld [vmem:[%s206 + $0xc0] sm:$0xf]
      %v263 = vld [vmem:[%s206 + $0xc4] sm:$0x1]
      %v264 = vld [vmem:[%s206 + $0xc8] sm:$0xf]
      %v265 = vld [vmem:[%s206 + $0xcc] sm:$0x1]
      %v266 = vld [vmem:[%s206 + $0xd8] sm:$0xf]
      %v267 = vld [vmem:[%s206 + $0xe0] sm:$0xf]
      %v268 = vld [vmem:[%s206 + $0xe8] sm:$0xf]
      %v269 = vld [vmem:[%s206 + $0xf0] sm:$0xf]
      %v270 = vld [vmem:[%s206 + $0xf8] sm:$0xf]
      %v271 = vld [vmem:[%s206 + $0x100] sm:$0xf]
      %v272 = vld [vmem:[%s206 + $0x108] sm:$0xf]
      %v273 = vld [vmem:[%s206 + $0x110] sm:$0xf]
      %v282 = vunpack.c.l.b16 %v241
      %v283 = vunpack.c.l.b16 %v242
      %v284 = vunpack.c.l.b16 %v243
      %v285 = vunpack.c.l.b16 %v244
      %v286 = vunpack.c.l.b16 %v245
      %v287 = vunpack.c.l.b16 %v246
      %v288 = vunpack.c.l.b16 %v247
      %v289 = vunpack.c.l.b16 %v248
      %v290 = vpack.c.b16 %v282, %v282
      %v291 = vpack.c.b16 %v283, %v283
      %v292 = vpack.c.b16 %v284, %v284
      %v293 = vpack.c.b16 %v285, %v285
      %v294 = vpack.c.b16 %v286, %v286
      %v295 = vpack.c.b16 %v287, %v287
      %v296 = vpack.c.b16 %v288, %v288
      %v297 = vpack.c.b16 %v289, %v289
      %298 = vrot.lane.b32.xlu0 %v290, 16
      %v299 = vpop.permute.xlu0 %298
      %300 = vrot.lane.b32.xlu0 %v291, 16
      %v301 = vpop.permute.xlu0 %300
      %302 = vrot.lane.b32.xlu0 %v292, 16
      %v303 = vpop.permute.xlu0 %302
      %304 = vrot.lane.b32.xlu0 %v293, 16
      %v305 = vpop.permute.xlu0 %304
      %306 = vrot.lane.b32.xlu0 %v294, 16
      %v307 = vpop.permute.xlu0 %306
      %308 = vrot.lane.b32.xlu0 %v295, 16
      %v309 = vpop.permute.xlu0 %308
      %310 = vrot.lane.b32.xlu0 %v296, 16
      %v311 = vpop.permute.xlu0 %310
      %312 = vrot.lane.b32.xlu0 %v297, 16
      %v313 = vpop.permute.xlu0 %312
      %v330 = vunpack.c.l.b16 %v223
      %v331 = vunpack.c.l.b16 %v224
      %v332 = vunpack.c.l.b16 %v225
      %v333 = vunpack.c.l.b16 %v226
      %v334 = vunpack.c.l.b16 %v227
      %v335 = vunpack.c.l.b16 %v228
      %v336 = vunpack.c.l.b16 %v229
      %v337 = vunpack.c.l.b16 %v230
      %v338 = vunpack.c.l.b16 %v231
      %v339 = vunpack.c.l.b16 %v232
      %v340 = vunpack.c.l.b16 %v233
      %v341 = vunpack.c.l.b16 %v234
      %v342 = vunpack.c.l.b16 %v235
      %v343 = vunpack.c.l.b16 %v236
      %v344 = vunpack.c.l.b16 %v237
      %v345 = vunpack.c.l.b16 %v238
      %v346 = vpack.c.b16 %v331, %v330
      %v347 = vpack.c.b16 %v333, %v332
      %v348 = vpack.c.b16 %v335, %v334
      %v349 = vpack.c.b16 %v337, %v336
      %v350 = vpack.c.b16 %v339, %v338
      %v351 = vpack.c.b16 %v341, %v340
      %v352 = vpack.c.b16 %v343, %v342
      %v353 = vpack.c.b16 %v345, %v344
      %v355 = vshrl.u32 %v346, 16
      %v357 = vshll.u32 %v346, 16
      %v359 = vrot.slane %v357, 1
      %v360 = vor.u32 %v355, %v359
      %v362 = vshrl.u32 %v347, 16
      %v364 = vshll.u32 %v347, 16
      %v366 = vrot.slane %v364, 1
      %v367 = vor.u32 %v362, %v366
      %v369 = vshrl.u32 %v348, 16
      %v371 = vshll.u32 %v348, 16
      %v373 = vrot.slane %v371, 1
      %v374 = vor.u32 %v369, %v373
      %v376 = vshrl.u32 %v349, 16
      %v378 = vshll.u32 %v349, 16
      %v380 = vrot.slane %v378, 1
      %v381 = vor.u32 %v376, %v380
      %v383 = vshrl.u32 %v350, 16
      %v385 = vshll.u32 %v350, 16
      %v387 = vrot.slane %v385, 1
      %v388 = vor.u32 %v383, %v387
      %v390 = vshrl.u32 %v351, 16
      %v392 = vshll.u32 %v351, 16
      %v394 = vrot.slane %v392, 1
      %v395 = vor.u32 %v390, %v394
      %v397 = vshrl.u32 %v352, 16
      %v399 = vshll.u32 %v352, 16
      %v401 = vrot.slane %v399, 1
      %v402 = vor.u32 %v397, %v401
      %v404 = vshrl.u32 %v353, 16
      %v406 = vshll.u32 %v353, 16
      %v408 = vrot.slane %v406, 1
      %v409 = vor.u32 %v404, %v408
      %410 = vrot.lane.b32.xlu0 %v360, 32
      %v411 = vpop.permute.xlu0 %410
      %412 = vrot.lane.b32.xlu0 %v367, 32
      %v413 = vpop.permute.xlu0 %412
      %414 = vrot.lane.b32.xlu0 %v374, 32
      %v415 = vpop.permute.xlu0 %414
      %416 = vrot.lane.b32.xlu0 %v381, 32
      %v417 = vpop.permute.xlu0 %416
      %418 = vrot.lane.b32.xlu0 %v388, 32
      %v419 = vpop.permute.xlu0 %418
      %420 = vrot.lane.b32.xlu0 %v395, 32
      %v421 = vpop.permute.xlu0 %420
      %422 = vrot.lane.b32.xlu0 %v402, 32
      %v423 = vpop.permute.xlu0 %422
      %424 = vrot.lane.b32.xlu0 %v409, 32
      %v425 = vpop.permute.xlu0 %424
      %v434 = vunpack.c.l.b16 %v250
      %v435 = vunpack.c.l.b16 %v252
      %v436 = vunpack.c.l.b16 %v254
      %v437 = vunpack.c.l.b16 %v256
      %v438 = vunpack.c.l.b16 %v258
      %v439 = vunpack.c.l.b16 %v260
      %v440 = vunpack.c.l.b16 %v262
      %v441 = vunpack.c.l.b16 %v264
      %v442 = vpack.c.b16 %v434, %v434
      %v443 = vpack.c.b16 %v435, %v435
      %v444 = vpack.c.b16 %v436, %v436
      %v445 = vpack.c.b16 %v437, %v437
      %v446 = vpack.c.b16 %v438, %v438
      %v447 = vpack.c.b16 %v439, %v439
      %v448 = vpack.c.b16 %v440, %v440
      %v449 = vpack.c.b16 %v441, %v441
      %450 = vrot.lane.b32.xlu0 %v442, 48
      %v451 = vpop.permute.xlu0 %450
      %452 = vrot.lane.b32.xlu0 %v443, 48
      %v453 = vpop.permute.xlu0 %452
      %454 = vrot.lane.b32.xlu0 %v444, 48
      %v455 = vpop.permute.xlu0 %454
      %456 = vrot.lane.b32.xlu0 %v445, 48
      %v457 = vpop.permute.xlu0 %456
      %458 = vrot.lane.b32.xlu0 %v446, 48
      %v459 = vpop.permute.xlu0 %458
      %460 = vrot.lane.b32.xlu0 %v447, 48
      %v461 = vpop.permute.xlu0 %460
      %462 = vrot.lane.b32.xlu0 %v448, 48
      %v463 = vpop.permute.xlu0 %462
      %464 = vrot.lane.b32.xlu0 %v449, 48
      %v465 = vpop.permute.xlu0 %464
      %v474 = vunpack.c.l.b16 %v266
      %v475 = vunpack.c.l.b16 %v267
      %v476 = vunpack.c.l.b16 %v268
      %v477 = vunpack.c.l.b16 %v269
      %v478 = vunpack.c.l.b16 %v270
      %v479 = vunpack.c.l.b16 %v271
      %v480 = vunpack.c.l.b16 %v272
      %v481 = vunpack.c.l.b16 %v273
      %v482 = vpack.c.b16 %v474, %v474
      %v483 = vpack.c.b16 %v475, %v475
      %v484 = vpack.c.b16 %v476, %v476
      %v485 = vpack.c.b16 %v477, %v477
      %v486 = vpack.c.b16 %v478, %v478
      %v487 = vpack.c.b16 %v479, %v479
      %v488 = vpack.c.b16 %v480, %v480
      %v489 = vpack.c.b16 %v481, %v481
      %490 = vrot.lane.b32.xlu0 %v482, 64
      %v491 = vpop.permute.xlu0 %490
      %492 = vrot.lane.b32.xlu0 %v483, 64
      %v493 = vpop.permute.xlu0 %492
      %494 = vrot.lane.b32.xlu0 %v484, 64
      %v495 = vpop.permute.xlu0 %494
      %496 = vrot.lane.b32.xlu0 %v485, 64
      %v497 = vpop.permute.xlu0 %496
      %498 = vrot.lane.b32.xlu0 %v486, 64
      %v499 = vpop.permute.xlu0 %498
      %500 = vrot.lane.b32.xlu0 %v487, 64
      %v501 = vpop.permute.xlu0 %500
      %502 = vrot.lane.b32.xlu0 %v488, 64
      %v503 = vpop.permute.xlu0 %502
      %504 = vrot.lane.b32.xlu0 %v489, 64
      %v505 = vpop.permute.xlu0 %504
      %v514 = vunpack.c.l.b16 %v251
      %v515 = vunpack.c.l.b16 %v253
      %v516 = vunpack.c.l.b16 %v255
      %v517 = vunpack.c.l.b16 %v257
      %v518 = vunpack.c.l.b16 %v259
      %v519 = vunpack.c.l.b16 %v261
      %v520 = vunpack.c.l.b16 %v263
      %v521 = vunpack.c.l.b16 %v265
      %v522 = vpack.c.b16 %v514, %v434
      %v523 = vpack.c.b16 %v515, %v435
      %v524 = vpack.c.b16 %v516, %v436
      %v525 = vpack.c.b16 %v517, %v437
      %v526 = vpack.c.b16 %v518, %v438
      %v527 = vpack.c.b16 %v519, %v439
      %v528 = vpack.c.b16 %v520, %v440
      %v529 = vpack.c.b16 %v521, %v441
      %v531 = vshrl.u32 %v522, 16
      %v533 = vshll.u32 %v522, 16
      %v535 = vrot.slane %v533, 1
      %v536 = vor.u32 %v531, %v535
      %v538 = vshrl.u32 %v523, 16
      %v540 = vshll.u32 %v523, 16
      %v542 = vrot.slane %v540, 1
      %v543 = vor.u32 %v538, %v542
      %v545 = vshrl.u32 %v524, 16
      %v547 = vshll.u32 %v524, 16
      %v549 = vrot.slane %v547, 1
      %v550 = vor.u32 %v545, %v549
      %v552 = vshrl.u32 %v525, 16
      %v554 = vshll.u32 %v525, 16
      %v556 = vrot.slane %v554, 1
      %v557 = vor.u32 %v552, %v556
      %v559 = vshrl.u32 %v526, 16
      %v561 = vshll.u32 %v526, 16
      %v563 = vrot.slane %v561, 1
      %v564 = vor.u32 %v559, %v563
      %v566 = vshrl.u32 %v527, 16
      %v568 = vshll.u32 %v527, 16
      %v570 = vrot.slane %v568, 1
      %v571 = vor.u32 %v566, %v570
      %v573 = vshrl.u32 %v528, 16
      %v575 = vshll.u32 %v528, 16
      %v577 = vrot.slane %v575, 1
      %v578 = vor.u32 %v573, %v577
      %v580 = vshrl.u32 %v529, 16
      %v582 = vshll.u32 %v529, 16
      %v584 = vrot.slane %v582, 1
      %v585 = vor.u32 %v580, %v584
      %586 = vrot.lane.b32.xlu0 %v536, 80
      %v587 = vpop.permute.xlu0 %586
      %588 = vrot.lane.b32.xlu0 %v543, 80
      %v589 = vpop.permute.xlu0 %588
      %590 = vrot.lane.b32.xlu0 %v550, 80
      %v591 = vpop.permute.xlu0 %590
      %592 = vrot.lane.b32.xlu0 %v557, 80
      %v593 = vpop.permute.xlu0 %592
      %594 = vrot.lane.b32.xlu0 %v564, 80
      %v595 = vpop.permute.xlu0 %594
      %596 = vrot.lane.b32.xlu0 %v571, 80
      %v597 = vpop.permute.xlu0 %596
      %598 = vrot.lane.b32.xlu0 %v578, 80
      %v599 = vpop.permute.xlu0 %598
      %600 = vrot.lane.b32.xlu0 %v585, 80
      %v601 = vpop.permute.xlu0 %600
      %v603 = vunpack.c.l.b16 %v239
      %v604 = vpack.c.b16 %v332, %v332
      %v605 = vpack.c.b16 %v334, %v334
      %v606 = vpack.c.b16 %v336, %v336
      %v607 = vpack.c.b16 %v338, %v338
      %v608 = vpack.c.b16 %v340, %v340
      %v609 = vpack.c.b16 %v342, %v342
      %v610 = vpack.c.b16 %v344, %v344
      %v611 = vpack.c.b16 %v603, %v603
      %612 = vrot.lane.b32.xlu0 %v604, 96
      %v613 = vpop.permute.xlu0 %612
      %614 = vrot.lane.b32.xlu0 %v605, 96
      %v615 = vpop.permute.xlu0 %614
      %616 = vrot.lane.b32.xlu0 %v606, 96
      %v617 = vpop.permute.xlu0 %616
      %618 = vrot.lane.b32.xlu0 %v607, 96
      %v619 = vpop.permute.xlu0 %618
      %620 = vrot.lane.b32.xlu0 %v608, 96
      %v621 = vpop.permute.xlu0 %620
      %622 = vrot.lane.b32.xlu0 %v609, 96
      %v623 = vpop.permute.xlu0 %622
      %624 = vrot.lane.b32.xlu0 %v610, 96
      %v625 = vpop.permute.xlu0 %624
      %626 = vrot.lane.b32.xlu0 %v611, 96
      %v627 = vpop.permute.xlu0 %626
      %v629 = vunpack.c.l.b16 %v249
      %v630 = vpack.c.b16 %v629, %v629
      %631 = vrot.lane.b32.xlu0 %v291, 112
      %v632 = vpop.permute.xlu0 %631
      %633 = vrot.lane.b32.xlu0 %v292, 112
      %v634 = vpop.permute.xlu0 %633
      %635 = vrot.lane.b32.xlu0 %v293, 112
      %v636 = vpop.permute.xlu0 %635
      %637 = vrot.lane.b32.xlu0 %v294, 112
      %v638 = vpop.permute.xlu0 %637
      %639 = vrot.lane.b32.xlu0 %v295, 112
      %v640 = vpop.permute.xlu0 %639
      %641 = vrot.lane.b32.xlu0 %v296, 112
      %v642 = vpop.permute.xlu0 %641
      %643 = vrot.lane.b32.xlu0 %v297, 112
      %v644 = vpop.permute.xlu0 %643
      %645 = vrot.lane.b32.xlu0 %v630, 112
      %v646 = vpop.permute.xlu0 %645
      %v648 = vunpack.c.l.b16 %v240
      %v649 = vpack.c.b16 %v648, %v603
      %v651 = vshrl.u32 %v649, 16
      %v653 = vshll.u32 %v649, 16
      %v655 = vrot.slane %v653, 1
      %v656 = vor.u32 %v651, %v655
      %vm657 = vcmask 130048
      %v660 = vsel %vm657, %v223, %v299
      %v663 = vsel %vm657, %v225, %v301
      %v666 = vsel %vm657, %v227, %v303
      %v669 = vsel %vm657, %v229, %v305
      %v672 = vsel %vm657, %v231, %v307
      %v675 = vsel %vm657, %v233, %v309
      %v678 = vsel %vm657, %v235, %v311
      %v681 = vsel %vm657, %v237, %v313
      %vm682 = vcmask 261120
      %v684 = vsel %vm682, %v660, %v411
      %v686 = vsel %vm682, %v663, %v413
      %v688 = vsel %vm682, %v666, %v415
      %v690 = vsel %vm682, %v669, %v417
      %v692 = vsel %vm682, %v672, %v419
      %v694 = vsel %vm682, %v675, %v421
      %v696 = vsel %vm682, %v678, %v423
      %v698 = vsel %vm682, %v681, %v425
      %vm699 = vcmask 392192
      %v701 = vsel %vm699, %v684, %v451
      %v703 = vsel %vm699, %v686, %v453
      %v705 = vsel %vm699, %v688, %v455
      %v707 = vsel %vm699, %v690, %v457
      %v709 = vsel %vm699, %v692, %v459
      %v711 = vsel %vm699, %v694, %v461
      %v713 = vsel %vm699, %v696, %v463
      %v715 = vsel %vm699, %v698, %v465
      %vm716 = vcmask 523264
      %v718 = vsel %vm716, %v701, %v491
      %v720 = vsel %vm716, %v703, %v493
      %v722 = vsel %vm716, %v705, %v495
      %v724 = vsel %vm716, %v707, %v497
      %v726 = vsel %vm716, %v709, %v499
      %v728 = vsel %vm716, %v711, %v501
      %v730 = vsel %vm716, %v713, %v503
      %v732 = vsel %vm716, %v715, %v505
      %vm733 = vcmask 654336
      %v735 = vsel %vm733, %v718, %v587
      %v737 = vsel %vm733, %v720, %v589
      %v739 = vsel %vm733, %v722, %v591
      %v741 = vsel %vm733, %v724, %v593
      %v743 = vsel %vm733, %v726, %v595
      %v745 = vsel %vm733, %v728, %v597
      %v747 = vsel %vm733, %v730, %v599
      %v749 = vsel %vm733, %v732, %v601
      %vm750 = vcmask 785408
      %v752 = vsel %vm750, %v735, %v613
      %v754 = vsel %vm750, %v737, %v615
      %v756 = vsel %vm750, %v739, %v617
      %v758 = vsel %vm750, %v741, %v619
      %v760 = vsel %vm750, %v743, %v621
      %v762 = vsel %vm750, %v745, %v623
      %v764 = vsel %vm750, %v747, %v625
      %v766 = vsel %vm750, %v749, %v627
      %vm767 = vcmask 916480
      %v769 = vsel %vm767, %v752, %v632
      %v771 = vsel %vm767, %v754, %v634
      %v773 = vsel %vm767, %v756, %v636
      %v775 = vsel %vm767, %v758, %v638
      %v777 = vsel %vm767, %v760, %v640
      %v779 = vsel %vm767, %v762, %v642
      %v781 = vsel %vm767, %v764, %v644
      %v783 = vsel %vm767, %v766, %v646
      %v792 = vunpack.c.l.b16 %v769
      %v793 = vunpack.c.l.b16 %v367
      %v794 = vunpack.c.l.b16 %v771
      %v795 = vunpack.c.l.b16 %v374
      %v796 = vunpack.c.l.b16 %v773
      %v797 = vunpack.c.l.b16 %v381
      %v798 = vunpack.c.l.b16 %v775
      %v799 = vunpack.c.l.b16 %v388
      %v800 = vunpack.c.l.b16 %v777
      %v801 = vunpack.c.l.b16 %v395
      %v802 = vunpack.c.l.b16 %v779
      %v803 = vunpack.c.l.b16 %v402
      %v804 = vunpack.c.l.b16 %v781
      %v805 = vunpack.c.l.b16 %v409
      %v806 = vunpack.c.l.b16 %v783
      %v807 = vunpack.c.l.b16 %v656
      %v808 = vld [vmem:[%s210] sm:$0xf]
      %v809 = vld [vmem:[%s210 + $0x4] sm:$0xf]
      %v810 = vld [vmem:[%s210 + $0x8] sm:$0xf]
      %v811 = vld [vmem:[%s210 + $0xc] sm:$0xf]
      %v812 = vld [vmem:[%s210 + $0x10] sm:$0xf]
      %v813 = vld [vmem:[%s210 + $0x14] sm:$0xf]
      %v814 = vld [vmem:[%s210 + $0x18] sm:$0xf]
      %v815 = vld [vmem:[%s210 + $0x1c] sm:$0xf]
      %v816 = vld [vmem:[%s210 + $0x20] sm:$0xf]
      %v817 = vld [vmem:[%s210 + $0x24] sm:$0xf]
      %v818 = vld [vmem:[%s210 + $0x28] sm:$0xf]
      %v819 = vld [vmem:[%s210 + $0x2c] sm:$0xf]
      %v820 = vld [vmem:[%s210 + $0x30] sm:$0xf]
      %v821 = vld [vmem:[%s210 + $0x34] sm:$0xf]
      %v822 = vld [vmem:[%s210 + $0x38] sm:$0xf]
      %v823 = vld [vmem:[%s210 + $0x3c] sm:$0xf]
      %v824 = vld [vmem:[%s210 + $0x40] sm:$0xf]
      %v825 = vld [vmem:[%s210 + $0x44] sm:$0xf]
      %v826 = vld [vmem:[%s213] sm:$0x1]
      %v828 = vlaneseq
      %v829 = vshrl.u32 %v828, 7
      %v830 = vsub.s32 0, %v829
      %v831 = vrot.slane %v826, %v830
      %v833 = vpack.c.b16 %v794, %v792
      %v834 = vpack.c.b16 %v795, %v793
      %v835 = vpack.c.b16 %v798, %v796
      %v836 = vpack.c.b16 %v799, %v797
      %v837 = vpack.c.b16 %v802, %v800
      %v838 = vpack.c.b16 %v803, %v801
      %v839 = vpack.c.b16 %v806, %v804
      %v840 = vpack.c.b16 %v807, %v805
      %v863 = vunpack.c.l.b16 %v808
      %v864 = vunpack.c.l.b16 %v809
      %v865 = vunpack.c.l.b16 %v810
      %v866 = vunpack.c.l.b16 %v811
      %v867 = vunpack.c.l.b16 %v812
      %v868 = vunpack.c.l.b16 %v813
      %v869 = vunpack.c.l.b16 %v814
      %v870 = vunpack.c.l.b16 %v815
      %v871 = vunpack.c.l.b16 %v816
      %v872 = vunpack.c.l.b16 %v817
      %v873 = vunpack.c.l.b16 %v818
      %v874 = vunpack.c.l.b16 %v819
      %v875 = vunpack.c.l.b16 %v820
      %v876 = vunpack.c.l.b16 %v821
      %v877 = vunpack.c.l.b16 %v822
      %v878 = vunpack.c.l.b16 %v823
      %v879 = vunpack.c.l.b16 %v824
      %v880 = vunpack.c.l.b16 %v825
      %v881 = vpack.c.b16 %v864, %v863
      %v882 = vpack.c.b16 %v866, %v865
      %v883 = vpack.c.b16 %v868, %v867
      %v884 = vpack.c.b16 %v870, %v869
      %v885 = vpack.c.b16 %v872, %v871
      %v886 = vpack.c.b16 %v874, %v873
      %v887 = vpack.c.b16 %v876, %v875
      %v888 = vpack.c.b16 %v878, %v877
      %v889 = vpack.c.b16 %v880, %v879
      %v900 = vsel %vm657, %v834, 0
      %v903 = vsel %vm657, %v836, 0
      %v906 = vsel %vm657, %v838, 0
      %v909 = vsel %vm657, %v840, 0
      %911 = vmatprep.subr.bf16.mxu0 0
      %912 = vmatpush1.bf16.msra.mxu0 %v888
      %913 = vmatprep.subr.bf16.mxu0 0
      %914 = vmatpush1.bf16.msra.mxu0 %v887
      %915 = vmatprep.subr.bf16.mxu0 0
      %916 = vmatpush1.bf16.msra.mxu0 %v886
      %917 = vmatprep.subr.bf16.mxu0 0
      %918 = vmatpush1.bf16.msra.mxu0 %v885
      %919 = vmatprep.subr.bf16.mxu0 0
      %920 = vmatpush1.bf16.msra.mxu0 %v884
      %921 = vmatprep.subr.bf16.mxu0 0
      %922 = vmatpush1.bf16.msra.mxu0 %v883
      %923 = vmatprep.subr.bf16.mxu0 0
      %924 = vmatpush1.bf16.msra.mxu0 %v882
      %925 = vmatprep.subr.bf16.mxu0 0
      %926 = vmatpush1.bf16.msra.mxu0 %v881
      %927 = vmatprep.subr.bf16.mxu0 0
      %928 = vmatpush2.bf16.msra.mxu0 0
      %929 = vmatprep.subr.bf16.mxu0 0
      %930 = vmatpush2.bf16.msra.mxu0 0
      %931 = vmatprep.subr.bf16.mxu0 0
      %932 = vmatpush2.bf16.msra.mxu0 0
      %933 = vmatprep.subr.bf16.mxu0 0
      %934 = vmatpush2.bf16.msra.mxu0 0
      %935 = vmatprep.subr.bf16.mxu0 0
      %936 = vmatpush2.bf16.msra.mxu0 0
      %937 = vmatprep.subr.bf16.mxu0 0
      %938 = vmatpush2.bf16.msra.mxu0 0
      %939 = vmatprep.subr.bf16.mxu0 0
      %940 = vmatpush2.bf16.msra.mxu0 0
      %941 = vmatprep.subr.bf16.mxu0 0
      %942 = vmatpush2.bf16.msra.mxu0 %v889
      %943 = vmatprep.mubr.bf16.mxu0 %v900
      %944 = vmatmul.mubr.bf16.gmra.mxu0 %v833
      %v945 = vpop.f32.mrf.mxu0
      %v946 = vadd.f32 %v831, %v945
      %v947 = vpop.f32.mrf.mxu0
      %v948 = vpop.f32.mrf.mxu0
      %v949 = vadd.f32 %v831, %v948
      %v950 = vpop.f32.mrf.mxu0
      %951 = vmatprep.mubr.bf16.mxu0 %v903
      %952 = vmatmul.mubr.bf16.gmra.mxu0 %v835
      %v953 = vpop.f32.mrf.mxu0
      %v954 = vadd.f32 %v831, %v953
      %v955 = vpop.f32.mrf.mxu0
      %v956 = vpop.f32.mrf.mxu0
      %v957 = vadd.f32 %v831, %v956
      %v958 = vpop.f32.mrf.mxu0
      %959 = vmatprep.mubr.bf16.mxu0 %v906
      %960 = vmatmul.mubr.bf16.gmra.mxu0 %v837
      %v961 = vpop.f32.mrf.mxu0
      %v962 = vadd.f32 %v831, %v961
      %v963 = vpop.f32.mrf.mxu0
      %v964 = vpop.f32.mrf.mxu0
      %v965 = vadd.f32 %v831, %v964
      %v966 = vpop.f32.mrf.mxu0
      %967 = vmatprep.mubr.bf16.mxu0 %v909
      %968 = vmatmul.mubr.bf16.gmra.mxu0 %v839
      %v969 = vpop.f32.mrf.mxu0
      %v970 = vadd.f32 %v831, %v969
      %v971 = vpop.f32.mrf.mxu0
      %v972 = vpop.f32.mrf.mxu0
      %v973 = vadd.f32 %v831, %v972
      %v974 = vpop.f32.mrf.mxu0
      %975 = vdwg.mxu0
      %v976 = vmax.f32 %v946, 0.0
      %v977 = vmax.f32 %v949, 0.0
      %v978 = vmax.f32 %v954, 0.0
      %v979 = vmax.f32 %v957, 0.0
      %v980 = vmax.f32 %v962, 0.0
      %v981 = vmax.f32 %v965, 0.0
      %v982 = vmax.f32 %v970, 0.0
      %v983 = vmax.f32 %v973, 0.0
      %984 = vst [vmem:[%s221] sm:$0xf] 0
      %985 = vst [vmem:[%s221 + $0x4] sm:$0x1] 0
      %986 = vst [vmem:[%s221 + $0x8] sm:$0xf] 0
      %987 = vst [vmem:[%s221 + $0xc] sm:$0x1] 0
      %988 = vst [vmem:[%s221 + $0x10] sm:$0xf] 0
      %989 = vst [vmem:[%s221 + $0x14] sm:$0x1] 0
      %990 = vst [vmem:[%s221 + $0x18] sm:$0xf] 0
      %991 = vst [vmem:[%s221 + $0x1c] sm:$0x1] 0
      %992 = vst [vmem:[%s221 + $0x20] sm:$0xf] 0
      %993 = vst [vmem:[%s221 + $0x24] sm:$0x1] 0
      %994 = vst [vmem:[%s221 + $0x28] sm:$0xf] 0
      %995 = vst [vmem:[%s221 + $0x2c] sm:$0x1] 0
      %996 = vst [vmem:[%s221 + $0x30] sm:$0xf] 0
      %997 = vst [vmem:[%s221 + $0x34] sm:$0x1] 0
      %998 = vst [vmem:[%s221 + $0x38] sm:$0xf] 0
      %999 = vst [vmem:[%s221 + $0x3c] sm:$0x1] 0
      %1000 = vst [vmem:[%s221 + $0x40] sm:$0xf] 0
      %1001 = vst [vmem:[%s221 + $0x44] sm:$0x1] 0
      %1002 = vst [vmem:[%s221 + $0x48] sm:$0xf] 0
      %1003 = vst [vmem:[%s221 + $0x4c] sm:$0x1] 0
      %v1004 = vpack.c.bf16 %v976, %v976
      %v1005 = vpack.c.bf16 %v977, %v977
      %v1006 = vpack.c.bf16 %v978, %v978
      %v1007 = vpack.c.bf16 %v979, %v979
      %v1008 = vpack.c.bf16 %v980, %v980
      %v1009 = vpack.c.bf16 %v981, %v981
      %v1010 = vpack.c.bf16 %v982, %v982
      %v1011 = vpack.c.bf16 %v983, %v983
      %v1020 = vunpack.c.l.b16 %v1004
      %v1021 = vunpack.c.l.b16 %v1005
      %v1022 = vunpack.c.l.b16 %v1006
      %v1023 = vunpack.c.l.b16 %v1007
      %v1024 = vunpack.c.l.b16 %v1008
      %v1025 = vunpack.c.l.b16 %v1009
      %v1026 = vunpack.c.l.b16 %v1010
      %v1027 = vunpack.c.l.b16 %v1011
      %v1028 = vpack.c.b16 %v1020, %v1020
      %v1029 = vpack.c.b16 %v1021, %v1021
      %v1030 = vpack.c.b16 %v1022, %v1022
      %v1031 = vpack.c.b16 %v1023, %v1023
      %v1032 = vpack.c.b16 %v1024, %v1024
      %v1033 = vpack.c.b16 %v1025, %v1025
      %v1034 = vpack.c.b16 %v1026, %v1026
      %v1035 = vpack.c.b16 %v1027, %v1027
      %v1037 = vshrl.u32 %v1028, 16
      %v1039 = vrot.slane %v1037, 7
      %v1040 = vshll.u32 %v1028, 16
      %v1042 = vor.u32 %v1039, %v1040
      %v1043 = vrot.slane %v1039, 4
      %v1045 = vshrl.u32 %v1029, 16
      %v1047 = vrot.slane %v1045, 7
      %v1048 = vshll.u32 %v1029, 16
      %v1050 = vor.u32 %v1047, %v1048
      %v1051 = vrot.slane %v1047, 4
      %v1053 = vshrl.u32 %v1030, 16
      %v1055 = vrot.slane %v1053, 7
      %v1056 = vshll.u32 %v1030, 16
      %v1058 = vor.u32 %v1055, %v1056
      %v1059 = vrot.slane %v1055, 4
      %v1061 = vshrl.u32 %v1031, 16
      %v1063 = vrot.slane %v1061, 7
      %v1064 = vshll.u32 %v1031, 16
      %v1066 = vor.u32 %v1063, %v1064
      %v1067 = vrot.slane %v1063, 4
      %v1069 = vshrl.u32 %v1032, 16
      %v1071 = vrot.slane %v1069, 7
      %v1072 = vshll.u32 %v1032, 16
      %v1074 = vor.u32 %v1071, %v1072
      %v1075 = vrot.slane %v1071, 4
      %v1077 = vshrl.u32 %v1033, 16
      %v1079 = vrot.slane %v1077, 7
      %v1080 = vshll.u32 %v1033, 16
      %v1082 = vor.u32 %v1079, %v1080
      %v1083 = vrot.slane %v1079, 4
      %v1085 = vshrl.u32 %v1034, 16
      %v1087 = vrot.slane %v1085, 7
      %v1088 = vshll.u32 %v1034, 16
      %v1090 = vor.u32 %v1087, %v1088
      %v1091 = vrot.slane %v1087, 4
      %v1093 = vshrl.u32 %v1035, 16
      %v1095 = vrot.slane %v1093, 7
      %v1096 = vshll.u32 %v1035, 16
      %v1098 = vor.u32 %v1095, %v1096
      %v1099 = vrot.slane %v1095, 4
      %s1116 = scalar_lea.vmem %s221, 8
      %vm1117 = vcmask 1043456
      %vm1118 = vsmask.f32 7938
      %vm1119 = vmand %vm1117, %vm1118
      %v1120 = vld [vmem:[%s1116] sm:$0xf]
      %v1121 = vsel %vm1119, %v1042, %v1120
      %1122 = vst [vmem:[%s1116] sm:$0xf] %v1121
      %vm1123 = vcmask 1040384
      %vm1124 = vsmask.f32 256
      %vm1125 = vmand %vm1123, %vm1124
      %v1126 = vld [vmem:[%s1116 + $0x4] sm:$0x1]
      %v1127 = vsel %vm1125, %v1043, %v1126
      %1128 = vst [vmem:[%s1116 + $0x4] sm:$0x1] %v1127
      %v1129 = vld [vmem:[%s1116 + $0x8] sm:$0xf]
      %v1130 = vsel %vm1119, %v1050, %v1129
      %1131 = vst [vmem:[%s1116 + $0x8] sm:$0xf] %v1130
      %v1132 = vld [vmem:[%s1116 + $0xc] sm:$0x1]
      %v1133 = vsel %vm1125, %v1051, %v1132
      %1134 = vst [vmem:[%s1116 + $0xc] sm:$0x1] %v1133
      %v1135 = vld [vmem:[%s1116 + $0x10] sm:$0xf]
      %v1136 = vsel %vm1119, %v1058, %v1135
      %1137 = vst [vmem:[%s1116 + $0x10] sm:$0xf] %v1136
      %v1138 = vld [vmem:[%s1116 + $0x14] sm:$0x1]
      %v1139 = vsel %vm1125, %v1059, %v1138
      %1140 = vst [vmem:[%s1116 + $0x14] sm:$0x1] %v1139
      %v1141 = vld [vmem:[%s1116 + $0x18] sm:$0xf]
      %v1142 = vsel %vm1119, %v1066, %v1141
      %1143 = vst [vmem:[%s1116 + $0x18] sm:$0xf] %v1142
      %v1144 = vld [vmem:[%s1116 + $0x1c] sm:$0x1]
      %v1145 = vsel %vm1125, %v1067, %v1144
      %1146 = vst [vmem:[%s1116 + $0x1c] sm:$0x1] %v1145
      %v1147 = vld [vmem:[%s1116 + $0x20] sm:$0xf]
      %v1148 = vsel %vm1119, %v1074, %v1147
      %1149 = vst [vmem:[%s1116 + $0x20] sm:$0xf] %v1148
      %v1150 = vld [vmem:[%s1116 + $0x24] sm:$0x1]
      %v1151 = vsel %vm1125, %v1075, %v1150
      %1152 = vst [vmem:[%s1116 + $0x24] sm:$0x1] %v1151
      %v1153 = vld [vmem:[%s1116 + $0x28] sm:$0xf]
      %v1154 = vsel %vm1119, %v1082, %v1153
      %1155 = vst [vmem:[%s1116 + $0x28] sm:$0xf] %v1154
      %v1156 = vld [vmem:[%s1116 + $0x2c] sm:$0x1]
      %v1157 = vsel %vm1125, %v1083, %v1156
      %1158 = vst [vmem:[%s1116 + $0x2c] sm:$0x1] %v1157
      %v1159 = vld [vmem:[%s1116 + $0x30] sm:$0xf]
      %v1160 = vsel %vm1119, %v1090, %v1159
      %1161 = vst [vmem:[%s1116 + $0x30] sm:$0xf] %v1160
      %v1162 = vld [vmem:[%s1116 + $0x34] sm:$0x1]
      %v1163 = vsel %vm1125, %v1091, %v1162
      %1164 = vst [vmem:[%s1116 + $0x34] sm:$0x1] %v1163
      %v1165 = vld [vmem:[%s1116 + $0x38] sm:$0xf]
      %v1166 = vsel %vm1119, %v1098, %v1165
      %1167 = vst [vmem:[%s1116 + $0x38] sm:$0xf] %v1166
      %v1168 = vld [vmem:[%s1116 + $0x3c] sm:$0x1]
      %v1169 = vsel %vm1125, %v1099, %v1168
      %1170 = vst [vmem:[%s1116 + $0x3c] sm:$0x1] %v1169
      %p1171 = scmp.lt.s32.totalorder %s19, 1
      %s1172 = scalar_select %p1171, %s19, 1
      %p1173 = scmp.lt.s32.totalorder %s18, 0
      %s1174 = scalar_select %p1173, %s18, 0
      %s1175 = smul.addr %s1172, 20
      %s1176 = sadd.s32 %s1174, %s1175
      %s1177 = smul.addr %s1176, 4
      %s1178 = scalar_lea.vmem %s3, %s1177
      // Predicated region
      $region33: #{residual_block_forward.2} parent=31 // pred_check
        %p1179 = pneg %p124
      $region34: #{residual_block_forward.2} parent=31 // pred_check_branch
        %1181 = sbr.rel (%p1179) target = $region36
      $region35: #{residual_block_forward.2} parent=31 // pred_region
        _
      $region36: #{residual_block_forward.2} parent=31 // pred_fallthru
        _
    $region32: #{residual_block_forward.2} parent=5 // pred_fallthru
      _
    %p1182 = scmp.le.s32.totalorder 2, %s9
    // Predicated region
    $region37: #{residual_block_forward.2} parent=5 // pred_check
      %p1183 = pneg %p1182
    $region38: #{residual_block_forward.2} parent=5 // pred_check_branch
      %1185 = sbr.rel (%p1183) target = $region40
    $region39: #{residual_block_forward.2} parent=5 // pred_region
      %s1186 = ssub.s32 %s9, 2
      // Predicated region
      $region41: #{residual_block_forward.2} parent=39 // pred_check
        %p1187 = pneg %p130
      $region42: #{residual_block_forward.2} parent=39 // pred_check_branch
        %1189 = sbr.rel (%p1187) target = $region44
      $region43: #{residual_block_forward.2} parent=39 // pred_region
        %p1190 = scmp.lt.s32.totalorder %s21, 1
        %s1191 = scalar_select %p1190, %s21, 1
        %p1192 = scmp.lt.s32.totalorder %s20, 0
        %s1193 = scalar_select %p1192, %s20, 0
        %s1194 = smul.addr %s1191, 20
        %s1195 = sadd.s32 %s1193, %s1194
        %s1196 = smul.addr %s1195, 4
        %s1197 = scalar_lea.vmem %s3, %s1196
      $region44: #{residual_block_forward.2} parent=39 // pred_fallthru
        _
    $region40: #{residual_block_forward.2} parent=5 // pred_fallthru
      _
  $region6: #{residual_block_forward.2} parent=0 // loop_footer
    %s13 = sadd.s32 1, %s9
  $region7: #{residual_block_forward.2} parent=0 // loop_footer_branch
    %8 = sbr.rel target = $region3
  $region8: #{residual_block_forward.2} parent=0 // loop_exit
    _

// kernel: residual_block_forward.3
$region0: #{residual_block_forward.3}
  #allocation0 [shape = 'u32[]', space=smem, size = 0x4, offset = 0x4, fixed_abs, tag = 'smem constant byte address 0x4 - core index']
  #allocation1 [shape = 'u32[144,128]{1,0:T(1,128)}', space=vmem, size = 0x12000, scoped, tag = 'internal scratch']
  %s0 = inlined_call_operand.vmem [shape: bf16[2,10,10,128], index: 0, kind: input, shape index: {}]
  %s1 = inlined_call_operand.vmem [shape: bf16[2,4,9,9,16], index: 1, kind: input, shape index: {}]
  %s2 = inlined_call_operand.vmem [shape: bf16[1152,128], index: 2, kind: input, shape index: {}]
  %s3 = inlined_call_operand.vmem [shape: bf16[16,128], index: 3, kind: input, shape index: {}]
  %s4 = inlined_call_operand.vmem [shape: f32[1,128], index: 4, kind: input, shape index: {}]
  %s5 = inlined_call_operand.vmem [shape: bf16[2,8,8,128], index: 5, kind: output, shape index: {}]
  %s6 = sld [smem:[#allocation0]]
  $region53: #{residual_block_forward.3} parent=0
    _
  %s8 = ssub.s32 1, %s6
  %s9 = scalar_select 0, %s8, %s6
  loop: start=0, step=1, limit=4
  $region2: #{residual_block_forward.3} parent=0 // loop_pre_header
    _
  $region3: #{residual_block_forward.3} parent=0 // loop_header
    %s11 = sphi 0, %s15
    %p12 = scmp.ge.s32.totalorder %s11, 4
    %s18 = sphi 0, %s30
    %s19 = sphi 0, %s26
    %s20 = sphi 0, %s18
    %s21 = sphi 0, %s19
    %s22 = sphi 0, %s20
    %s23 = sphi 0, %s21
    %s33 = sphi 0, %s35
    %s36 = sphi 0, %s33
    %s37 = sphi 0, %s36
    %s53 = sphi 0, %s37
    %s59 = sphi 0, %s61
    %s62 = sphi 0, %s59
    %s63 = sphi 0, %s62
    %s79 = sphi 0, %s63
    %s85 = sphi 0, %s87
    %s88 = sphi 0, %s85
    %s89 = sphi 0, %s88
    %s105 = sphi 0, %s89
    %s111 = sphi 0, %s113
    %s114 = sphi 0, %s111
    %s115 = sphi 0, %s114
    %s131 = sphi 0, %s115
    %s137 = sphi 0, %s139
    %s140 = sphi 0, %s137
    %s141 = sphi 0, %s140
    %s157 = sphi 0, %s141
    %s165 = sphi 0, %s167
    %s168 = sphi 0, %s165
    %s169 = sphi 0, %s168
    %s185 = sphi 0, %s169
  $region4: #{residual_block_forward.3} parent=0 // loop_header_branch
    %14 = sbr.rel (%p12) target = $region8
  $region5: #{residual_block_forward.3} parent=0 // loop_body
    %s16 = ssub.s32 %s11, 1
    %s17 = ssub.s32 %s11, 2
    %s24 = sadd.s32 1, %s19
    %p25 = scmp.ge.s32.totalorder %s24, 2
    %s26 = scalar_select %p25, 0, %s24
    %s27 = sadd.s32 1, %s18
    %s28 = scalar_select %p25, %s27, %s18
    %p29 = scmp.ge.s32.totalorder %s28, 1
    %s30 = scalar_select %p29, 0, %s28
    %s31 = ssub.s32 %s19, %s26
    %p32 = scmp.eq.s32.totalorder %s31, 0
    %s34 = sadd.s32 %s33, 1
    %s35 = scalar_select %p32, %s33, %s34
    %p38 = pneg %p32
    %p39 = scmp.eq.s32.totalorder %s11, 1
    %p40 = por %p38, %p39
    %p41 = scmp.ne.s32.totalorder %s33, %s36
    %p42 = scmp.eq.s32.totalorder %s11, 0
    %p43 = por %p41, %p42
    %p44 = scmp.ne.s32.totalorder %s33, %s36
    %p45 = scmp.eq.s32.totalorder %s16, 1
    %p46 = por %p44, %p45
    %p47 = scmp.ne.s32.totalorder %s36, %s37
    %p48 = scmp.eq.s32.totalorder %s16, 0
    %p49 = por %p47, %p48
    %p50 = scmp.ne.s32.totalorder %s36, %s37
    %p51 = scmp.eq.s32.totalorder %s17, 1
    %p52 = por %p50, %p51
    %p54 = scmp.ne.s32.totalorder %s37, %s53
    %p55 = scmp.eq.s32.totalorder %s17, 0
    %p56 = por %p54, %p55
    %s57 = ssub.s32 %s19, %s26
    %p58 = scmp.eq.s32.totalorder %s57, 0
    %s60 = sadd.s32 %s59, 1
    %s61 = scalar_select %p58, %s59, %s60
    %p64 = pneg %p58
    %p65 = scmp.eq.s32.totalorder %s11, 1
    %p66 = por %p64, %p65
    %p67 = scmp.ne.s32.totalorder %s59, %s62
    %p68 = scmp.eq.s32.totalorder %s11, 0
    %p69 = por %p67, %p68
    %p70 = scmp.ne.s32.totalorder %s59, %s62
    %p71 = scmp.eq.s32.totalorder %s16, 1
    %p72 = por %p70, %p71
    %p73 = scmp.ne.s32.totalorder %s62, %s63
    %p74 = scmp.eq.s32.totalorder %s16, 0
    %p75 = por %p73, %p74
    %p76 = scmp.ne.s32.totalorder %s62, %s63
    %p77 = scmp.eq.s32.totalorder %s17, 1
    %p78 = por %p76, %p77
    %p80 = scmp.ne.s32.totalorder %s63, %s79
    %p81 = scmp.eq.s32.totalorder %s17, 0
    %p82 = por %p80, %p81
    %s83 = ssub.s32 %s18, %s30
    %p84 = scmp.eq.s32.totalorder %s83, 0
    %s86 = sadd.s32 %s85, 1
    %s87 = scalar_select %p84, %s85, %s86
    %p90 = pneg %p84
    %p91 = scmp.eq.s32.totalorder %s11, 1
    %p92 = por %p90, %p91
    %p93 = scmp.ne.s32.totalorder %s85, %s88
    %p94 = scmp.eq.s32.totalorder %s11, 0
    %p95 = por %p93, %p94
    %p96 = scmp.ne.s32.totalorder %s85, %s88
    %p97 = scmp.eq.s32.totalorder %s16, 1
    %p98 = por %p96, %p97
    %p99 = scmp.ne.s32.totalorder %s88, %s89
    %p100 = scmp.eq.s32.totalorder %s16, 0
    %p101 = por %p99, %p100
    %p102 = scmp.ne.s32.totalorder %s88, %s89
    %p103 = scmp.eq.s32.totalorder %s17, 1
    %p104 = por %p102, %p103
    %p106 = scmp.ne.s32.totalorder %s89, %s105
    %p107 = scmp.eq.s32.totalorder %s17, 0
    %p108 = por %p106, %p107
    %s109 = ssub.s32 %s18, %s30
    %p110 = scmp.eq.s32.totalorder %s109, 0
    %s112 = sadd.s32 %s111, 1
    %s113 = scalar_select %p110, %s111, %s112
    %p116 = pneg %p110
    %p117 = scmp.eq.s32.totalorder %s11, 1
    %p118 = por %p116, %p117
    %p119 = scmp.ne.s32.totalorder %s111, %s114
    %p120 = scmp.eq.s32.totalorder %s11, 0
    %p121 = por %p119, %p120
    %p122 = scmp.ne.s32.totalorder %s111, %s114
    %p123 = scmp.eq.s32.totalorder %s16, 1
    %p124 = por %p122, %p123
    %p125 = scmp.ne.s32.totalorder %s114, %s115
    %p126 = scmp.eq.s32.totalorder %s16, 0
    %p127 = por %p125, %p126
    %p128 = scmp.ne.s32.totalorder %s114, %s115
    %p129 = scmp.eq.s32.totalorder %s17, 1
    %p130 = por %p128, %p129
    %p132 = scmp.ne.s32.totalorder %s115, %s131
    %p133 = scmp.eq.s32.totalorder %s17, 0
    %p134 = por %p132, %p133
    %s135 = ssub.s32 %s18, %s30
    %p136 = scmp.eq.s32.totalorder %s135, 0
    %s138 = sadd.s32 %s137, 1
    %s139 = scalar_select %p136, %s137, %s138
    %p142 = pneg %p136
    %p143 = scmp.eq.s32.totalorder %s11, 1
    %p144 = por %p142, %p143
    %p145 = scmp.ne.s32.totalorder %s137, %s140
    %p146 = scmp.eq.s32.totalorder %s11, 0
    %p147 = por %p145, %p146
    %p148 = scmp.ne.s32.totalorder %s137, %s140
    %p149 = scmp.eq.s32.totalorder %s16, 1
    %p150 = por %p148, %p149
    %p151 = scmp.ne.s32.totalorder %s140, %s141
    %p152 = scmp.eq.s32.totalorder %s16, 0
    %p153 = por %p151, %p152
    %p154 = scmp.ne.s32.totalorder %s140, %s141
    %p155 = scmp.eq.s32.totalorder %s17, 1
    %p156 = por %p154, %p155
    %p158 = scmp.ne.s32.totalorder %s141, %s157
    %p159 = scmp.eq.s32.totalorder %s17, 0
    %p160 = por %p158, %p159
    %s161 = ssub.s32 %s19, %s26
    %s162 = ssub.s32 %s18, %s30
    %s163 = sor.u32 %s161, %s162
    %p164 = scmp.eq.s32.totalorder %s163, 0
    %s166 = sadd.s32 %s165, 1
    %s167 = scalar_select %p164, %s165, %s166
    %p170 = pneg %p164
    %p171 = scmp.eq.s32.totalorder %s11, 1
    %p172 = por %p170, %p171
    %p173 = scmp.ne.s32.totalorder %s165, %s168
    %p174 = scmp.eq.s32.totalorder %s11, 0
    %p175 = por %p173, %p174
    %p176 = scmp.ne.s32.totalorder %s165, %s168
    %p177 = scmp.eq.s32.totalorder %s16, 1
    %p178 = por %p176, %p177
    %p179 = scmp.ne.s32.totalorder %s168, %s169
    %p180 = scmp.eq.s32.totalorder %s16, 0
    %p181 = por %p179, %p180
    %p182 = scmp.ne.s32.totalorder %s168, %s169
    %p183 = scmp.eq.s32.totalorder %s17, 1
    %p184 = por %p182, %p183
    %p186 = scmp.ne.s32.totalorder %s169, %s185
    %p187 = scmp.eq.s32.totalorder %s17, 0
    %p188 = por %p186, %p187
    %p189 = scmp.le.s32.totalorder 1, %s11
    %p190 = scmp.lt.s32.totalorder %s11, 3
    %p191 = pnand %p189, %p190
    %p192 = pneg %p191
    // Predicated region
    $region9: #{residual_block_forward.3} parent=5 // pred_check
      _
    $region10: #{residual_block_forward.3} parent=5 // pred_check_branch
      %194 = sbr.rel (%p191) target = $region12
    $region11: #{residual_block_forward.3} parent=5 // pred_region
      %s195 = ssub.s32 %s11, 1
      // Predicated region
      $region13: #{residual_block_forward.3} parent=11 // pred_check
        %p196 = pneg %p101
      $region14: #{residual_block_forward.3} parent=11 // pred_check_branch
        %198 = sbr.rel (%p196) target = $region16
      $region15: #{residual_block_forward.3} parent=11 // pred_region
        %p199 = scmp.lt.s32.totalorder %s20, 0
        %s200 = scalar_select %p199, %s20, 0
        %s201 = smul.addr %s200, 4
        %s202 = scalar_lea.vmem %s2, %s201
      $region16: #{residual_block_forward.3} parent=11 // pred_fallthru
        _
      // Predicated region
      $region17: #{residual_block_forward.3} parent=11 // pred_check
        %p203 = pneg %p127
      $region18: #{residual_block_forward.3} parent=11 // pred_check_branch
        %205 = sbr.rel (%p203) target = $region20
      $region19: #{residual_block_forward.3} parent=11 // pred_region
        %p206 = scmp.lt.s32.totalorder %s20, 0
        %s207 = scalar_select %p206, %s20, 0
        %s208 = smul.addr %s207, 4
        %s209 = scalar_lea.vmem %s3, %s208
      $region20: #{residual_block_forward.3} parent=11 // pred_fallthru
        _
      // Predicated region
      $region21: #{residual_block_forward.3} parent=11 // pred_check
        %p210 = pneg %p153
      $region22: #{residual_block_forward.3} parent=11 // pred_check_branch
        %212 = sbr.rel (%p210) target = $region24
      $region23: #{residual_block_forward.3} parent=11 // pred_region
        %p213 = scmp.lt.s32.totalorder %s20, 0
        %s214 = scalar_select %p213, %s20, 0
        %s215 = scalar_lea.vmem %s4, %s214
      $region24: #{residual_block_forward.3} parent=11 // pred_fallthru
        _
    $region12: #{residual_block_forward.3} parent=5 // pred_fallthru
      _
    %p216 = scmp.lt.s32.totalorder %s11, 2
    // Predicated region
    $region25: #{residual_block_forward.3} parent=5 // pred_check
      %p217 = pneg %p216
    $region26: #{residual_block_forward.3} parent=5 // pred_check_branch
      %219 = sbr.rel (%p217) target = $region28
    $region27: #{residual_block_forward.3} parent=5 // pred_region
      // Predicated region
      $region29: #{residual_block_forward.3} parent=27 // pred_check
        %p220 = pneg %p43
      $region30: #{residual_block_forward.3} parent=27 // pred_check_branch
        %222 = sbr.rel (%p220) target = $region32
      $region31: #{residual_block_forward.3} parent=27 // pred_region
        %p223 = scmp.lt.s32.totalorder %s19, 1
        %s224 = scalar_select %p223, %s19, 1
        %s225 = smul.addr %s224, 20
        %s226 = smul.addr %s225, 4
        %s227 = scalar_lea.vmem %s0, %s226
      $region32: #{residual_block_forward.3} parent=27 // pred_fallthru
        _
      // Predicated region
      $region33: #{residual_block_forward.3} parent=27 // pred_check
        %p228 = pneg %p69
      $region34: #{residual_block_forward.3} parent=27 // pred_check_branch
        %230 = sbr.rel (%p228) target = $region36
      $region35: #{residual_block_forward.3} parent=27 // pred_region
        %p231 = scmp.lt.s32.totalorder %s19, 1
        %s232 = scalar_select %p231, %s19, 1
        %s233 = smul.addr %s232, 72
        %s234 = sadd.s32 54, %s233
        %s235 = smul.addr %s234, 4
        %s236 = scalar_lea.vmem %s1, %s235
      $region36: #{residual_block_forward.3} parent=27 // pred_fallthru
        _
    $region28: #{residual_block_forward.3} parent=5 // pred_fallthru
      _
    %p237 = scmp.le.s32.totalorder 1, %s11
    %p238 = scmp.lt.s32.totalorder %s11, 3
    %p239 = pnand %p237, %p238
    %p240 = pneg %p239
    // Predicated region
    $region37: #{residual_block_forward.3} parent=5 // pred_check
      _
    $region38: #{residual_block_forward.3} parent=5 // pred_check_branch
      %242 = sbr.rel (%p239) target = $region40
    $region39: #{residual_block_forward.3} parent=5 // pred_region
      %s243 = ssub.s32 %s11, 1
      %p244 = scmp.lt.s32.totalorder %s21, 1
      %s245 = scalar_select %p244, %s21, 1
      %s246 = smul.addr %s245, 20
      %s247 = smul.addr %s246, 4
      %s248 = scalar_lea.vmem %s0, %s247
      %p249 = pneg %p49
      %p250 = pneg %p46
      %p251 = scmp.lt.s32.totalorder %s21, 1
      %s252 = scalar_select %p251, %s21, 1
      %s253 = smul.addr %s252, 72
      %s254 = sadd.s32 54, %s253
      %s255 = smul.addr %s254, 4
      %s256 = scalar_lea.vmem %s1, %s255
      %p257 = pneg %p75
      %p258 = pneg %p72
      %p259 = scmp.lt.s32.totalorder %s20, 0
      %s260 = scalar_select %p259, %s20, 0
      %s261 = smul.addr %s260, 4
      %s262 = scalar_lea.vmem %s2, %s261
      %p263 = pneg %p101
      %p264 = pneg %p98
      %p265 = scmp.lt.s32.totalorder %s20, 0
      %s266 = scalar_select %p265, %s20, 0
      %s267 = smul.addr %s266, 4
      %s268 = scalar_lea.vmem %s3, %s267
      %p269 = pneg %p127
      %p270 = pneg %p124
      %p271 = scmp.lt.s32.totalorder %s20, 0
      %s272 = scalar_select %p271, %s20, 0
      %s273 = scalar_lea.vmem %s4, %s272
      %p274 = pneg %p153
      %p275 = pneg %p150
      %p276 = pneg %p181
      %p277 = pneg %p178
      %p278 = scmp.lt.s32.totalorder %s21, 1
      %s279 = scalar_select %p278, %s21, 1
      %p280 = scmp.lt.s32.totalorder %s20, 0
      %s281 = scalar_select %p280, %s20, 0
      %s282 = smul.addr %s279, 8
      %s283 = sadd.s32 %s281, %s282
      %s284 = smul.addr %s283, 4
      %s285 = scalar_lea.vmem %s5, %s284
      %p286 = scmp.lt.s32.totalorder %s21, 1
      %s287 = scalar_select %p286, %s21, 1
      %s288 = smul.addr %s287, 20
      %s289 = smul.addr %s288, 4
      %s290 = scalar_lea.vmem %s0, %s289
      %p291 = scmp.lt.s32.totalorder %s21, 1
      %s292 = scalar_select %p291, %s21, 1
      %s293 = smul.addr %s292, 72
      %s294 = sadd.s32 54, %s293
      %s295 = smul.addr %s294, 4
      %s296 = scalar_lea.vmem %s1, %s295
      %p297 = scmp.lt.s32.totalorder %s20, 0
      %s298 = scalar_select %p297, %s20, 0
      %s299 = smul.addr %s298, 4
      %s300 = scalar_lea.vmem %s2, %s299
      %p301 = scmp.lt.s32.totalorder %s20, 0
      %s302 = scalar_select %p301, %s20, 0
      %s303 = smul.addr %s302, 4
      %s304 = scalar_lea.vmem %s3, %s303
      %p305 = scmp.lt.s32.totalorder %s20, 0
      %s306 = scalar_select %p305, %s20, 0
      %s307 = scalar_lea.vmem %s4, %s306
      %p308 = scmp.lt.s32.totalorder %s21, 1
      %s309 = scalar_select %p308, %s21, 1
      %p310 = scmp.lt.s32.totalorder %s20, 0
      %s311 = scalar_select %p310, %s20, 0
      %s312 = smul.addr %s309, 8
      %s313 = sadd.s32 %s311, %s312
      %s314 = smul.addr %s313, 4
      %s315 = scalar_lea.vmem %s5, %s314
      %v317 = vld [vmem:[%s290] sm:$0xf]
      %v318 = vld [vmem:[%s290 + $0x4] sm:$0x1]
      %v319 = vld [vmem:[%s290 + $0x8] sm:$0xf]
      %v320 = vld [vmem:[%s290 + $0xc] sm:$0x1]
      %v321 = vld [vmem:[%s290 + $0x10] sm:$0xf]
      %v322 = vld [vmem:[%s290 + $0x14] sm:$0x1]
      %v323 = vld [vmem:[%s290 + $0x18] sm:$0xf]
      %v324 = vld [vmem:[%s290 + $0x1c] sm:$0x1]
      %v325 = vld [vmem:[%s290 + $0x20] sm:$0xf]
      %v326 = vld [vmem:[%s290 + $0x24] sm:$0x1]
      %v327 = vld [vmem:[%s290 + $0x28] sm:$0xf]
      %v328 = vld [vmem:[%s290 + $0x2c] sm:$0x1]
      %v329 = vld [vmem:[%s290 + $0x30] sm:$0xf]
      %v330 = vld [vmem:[%s290 + $0x34] sm:$0x1]
      %v331 = vld [vmem:[%s290 + $0x38] sm:$0xf]
      %v332 = vld [vmem:[%s290 + $0x3c] sm:$0x1]
      %v333 = vld [vmem:[%s290 + $0x40] sm:$0xf]
      %v334 = vld [vmem:[%s290 + $0x44] sm:$0x1]
      %v335 = vld [vmem:[%s290 + $0x48] sm:$0xf]
      %v336 = vld [vmem:[%s290 + $0x4c] sm:$0x1]
      %v353 = vunpack.c.l.b16 %v317
      %v354 = vunpack.c.l.b16 %v318
      %v355 = vunpack.c.l.b16 %v319
      %v356 = vunpack.c.l.b16 %v320
      %v357 = vunpack.c.l.b16 %v321
      %v358 = vunpack.c.l.b16 %v322
      %v359 = vunpack.c.l.b16 %v323
      %v360 = vunpack.c.l.b16 %v324
      %v361 = vunpack.c.l.b16 %v325
      %v362 = vunpack.c.l.b16 %v326
      %v363 = vunpack.c.l.b16 %v327
      %v364 = vunpack.c.l.b16 %v328
      %v365 = vunpack.c.l.b16 %v329
      %v366 = vunpack.c.l.b16 %v330
      %v367 = vunpack.c.l.b16 %v331
      %v368 = vunpack.c.l.b16 %v332
      %v369 = vpack.c.b16 %v354, %v353
      %v370 = vpack.c.b16 %v356, %v355
      %v371 = vpack.c.b16 %v358, %v357
      %v372 = vpack.c.b16 %v360, %v359
      %v373 = vpack.c.b16 %v362, %v361
      %v374 = vpack.c.b16 %v364, %v363
      %v375 = vpack.c.b16 %v366, %v365
      %v376 = vpack.c.b16 %v368, %v367
      %v378 = vshrl.u32 %v369, 16
      %v380 = vshll.u32 %v369, 16
      %v382 = vrot.slane %v380, 1
      %v383 = vor.u32 %v378, %v382
      %v385 = vshrl.u32 %v370, 16
      %v387 = vshll.u32 %v370, 16
      %v389 = vrot.slane %v387, 1
      %v390 = vor.u32 %v385, %v389
      %v392 = vshrl.u32 %v371, 16
      %v394 = vshll.u32 %v371, 16
      %v396 = vrot.slane %v394, 1
      %v397 = vor.u32 %v392, %v396
      %v399 = vshrl.u32 %v372, 16
      %v401 = vshll.u32 %v372, 16
      %v403 = vrot.slane %v401, 1
      %v404 = vor.u32 %v399, %v403
      %v406 = vshrl.u32 %v373, 16
      %v408 = vshll.u32 %v373, 16
      %v410 = vrot.slane %v408, 1
      %v411 = vor.u32 %v406, %v410
      %v413 = vshrl.u32 %v374, 16
      %v415 = vshll.u32 %v374, 16
      %v417 = vrot.slane %v415, 1
      %v418 = vor.u32 %v413, %v417
      %v420 = vshrl.u32 %v375, 16
      %v422 = vshll.u32 %v375, 16
      %v424 = vrot.slane %v422, 1
      %v425 = vor.u32 %v420, %v424
      %v427 = vshrl.u32 %v376, 16
      %v429 = vshll.u32 %v376, 16
      %v431 = vrot.slane %v429, 1
      %v432 = vor.u32 %v427, %v431
      %v433 = vrot.slane %v369, 1
      %v434 = vrot.slane %v370, 1
      %v435 = vrot.slane %v371, 1
      %v436 = vrot.slane %v372, 1
      %v437 = vrot.slane %v373, 1
      %v438 = vrot.slane %v374, 1
      %v439 = vrot.slane %v375, 1
      %v440 = vrot.slane %v376, 1
      %v443 = vunpack.c.l.b16 %v333
      %v444 = vunpack.c.l.b16 %v334
      %v445 = vpack.c.b16 %v444, %v443
      %v447 = vshrl.u32 %v445, 16
      %v449 = vshll.u32 %v445, 16
      %v451 = vrot.slane %v449, 1
      %v452 = vor.u32 %v447, %v451
      %v453 = vrot.slane %v445, 1
      %v456 = vunpack.c.l.b16 %v335
      %v457 = vunpack.c.l.b16 %v336
      %v458 = vpack.c.b16 %v457, %v456
      %v460 = vshrl.u32 %v458, 16
      %v462 = vshll.u32 %v458, 16
      %v464 = vrot.slane %v462, 1
      %v465 = vor.u32 %v460, %v464
      %v466 = vrot.slane %v458, 1
      %v467 = vunpack.c.l.b16 %v383
      %v468 = vunpack.c.l.b16 %v433
      %v469 = vunpack.c.l.b16 %v390
      %v470 = vunpack.c.l.b16 %v434
      %v471 = vunpack.c.l.b16 %v397
      %v472 = vunpack.c.l.b16 %v435
      %v473 = vunpack.c.l.b16 %v404
      %v474 = vunpack.c.l.b16 %v436
      %v475 = vunpack.c.l.b16 %v411
      %v476 = vunpack.c.l.b16 %v437
      %v477 = vunpack.c.l.b16 %v418
      %v478 = vunpack.c.l.b16 %v438
      %v479 = vunpack.c.l.b16 %v425
      %v480 = vunpack.c.l.b16 %v439
      %v481 = vunpack.c.l.b16 %v432
      %v482 = vunpack.c.l.b16 %v440
      %v483 = vunpack.c.l.b16 %v452
      %v484 = vunpack.c.l.b16 %v453
      %v485 = vunpack.c.l.b16 %v465
      %v486 = vunpack.c.l.b16 %v466
      %v487 = vld [vmem:[%s300] sm:$0xf]
      %v488 = vld [vmem:[%s300 + $0x4] sm:$0xf]
      %v489 = vld [vmem:[%s300 + $0x8] sm:$0xf]
      %v490 = vld [vmem:[%s300 + $0xc] sm:$0xf]
      %v491 = vld [vmem:[%s300 + $0x10] sm:$0xf]
      %v492 = vld [vmem:[%s300 + $0x14] sm:$0xf]
      %v493 = vld [vmem:[%s300 + $0x18] sm:$0xf]
      %v494 = vld [vmem:[%s300 + $0x1c] sm:$0xf]
      %v495 = vld [vmem:[%s300 + $0x20] sm:$0xf]
      %v496 = vld [vmem:[%s300 + $0x24] sm:$0xf]
      %v497 = vld [vmem:[%s300 + $0x28] sm:$0xf]
      %v498 = vld [vmem:[%s300 + $0x2c] sm:$0xf]
      %v499 = vld [vmem:[%s300 + $0x30] sm:$0xf]
      %v500 = vld [vmem:[%s300 + $0x34] sm:$0xf]
      %v501 = vld [vmem:[%s300 + $0x38] sm:$0xf]
      %v502 = vld [vmem:[%s300 + $0x3c] sm:$0xf]
      %v503 = vld [vmem:[%s300 + $0x40] sm:$0xf]
      %v504 = vld [vmem:[%s300 + $0x44] sm:$0xf]
      %v505 = vld [vmem:[%s300 + $0x48] sm:$0xf]
      %v506 = vld [vmem:[%s300 + $0x4c] sm:$0xf]
      %v507 = vld [vmem:[%s300 + $0x50] sm:$0xf]
      %v508 = vld [vmem:[%s300 + $0x54] sm:$0xf]
      %v509 = vld [vmem:[%s300 + $0x58] sm:$0xf]
      %v510 = vld [vmem:[%s300 + $0x5c] sm:$0xf]
      %v511 = vld [vmem:[%s300 + $0x60] sm:$0xf]
      %v512 = vld [vmem:[%s300 + $0x64] sm:$0xf]
      %v513 = vld [vmem:[%s300 + $0x68] sm:$0xf]
      %v514 = vld [vmem:[%s300 + $0x6c] sm:$0xf]
      %v515 = vld [vmem:[%s300 + $0x70] sm:$0xf]
      %v516 = vld [vmem:[%s300 + $0x74] sm:$0xf]
      %v517 = vld [vmem:[%s300 + $0x78] sm:$0xf]
      %v518 = vld [vmem:[%s300 + $0x7c] sm:$0xf]
      %v519 = vld [vmem:[%s300 + $0x80] sm:$0xf]
      %v520 = vld [vmem:[%s300 + $0x84] sm:$0xf]
      %v521 = vld [vmem:[%s300 + $0x88] sm:$0xf]
      %v522 = vld [vmem:[%s300 + $0x8c] sm:$0xf]
      %v523 = vld [vmem:[%s300 + $0x90] sm:$0xf]
      %v524 = vld [vmem:[%s300 + $0x94] sm:$0xf]
      %v525 = vld [vmem:[%s300 + $0x98] sm:$0xf]
      %v526 = vld [vmem:[%s300 + $0x9c] sm:$0xf]
      %v527 = vld [vmem:[%s300 + $0xa0] sm:$0xf]
      %v528 = vld [vmem:[%s300 + $0xa4] sm:$0xf]
      %v529 = vld [vmem:[%s300 + $0xa8] sm:$0xf]
      %v530 = vld [vmem:[%s300 + $0xac] sm:$0xf]
      %v531 = vld [vmem:[%s300 + $0xb0] sm:$0xf]
      %v532 = vld [vmem:[%s300 + $0xb4] sm:$0xf]
      %v533 = vld [vmem:[%s300 + $0xb8] sm:$0xf]
      %v534 = vld [vmem:[%s300 + $0xbc] sm:$0xf]
      %v535 = vld [vmem:[%s300 + $0xc0] sm:$0xf]
      %v536 = vld [vmem:[%s300 + $0xc4] sm:$0xf]
      %v537 = vld [vmem:[%s300 + $0xc8] sm:$0xf]
      %v538 = vld [vmem:[%s300 + $0xcc] sm:$0xf]
      %v539 = vld [vmem:[%s300 + $0xd0] sm:$0xf]
      %v540 = vld [vmem:[%s300 + $0xd4] sm:$0xf]
      %v541 = vld [vmem:[%s300 + $0xd8] sm:$0xf]
      %v542 = vld [vmem:[%s300 + $0xdc] sm:$0xf]
      %v543 = vld [vmem:[%s300 + $0xe0] sm:$0xf]
      %v544 = vld [vmem:[%s300 + $0xe4] sm:$0xf]
      %v545 = vld [vmem:[%s300 + $0xe8] sm:$0xf]
      %v546 = vld [vmem:[%s300 + $0xec] sm:$0xf]
      %v547 = vld [vmem:[%s300 + $0xf0] sm:$0xf]
      %v548 = vld [vmem:[%s300 + $0xf4] sm:$0xf]
      %v549 = vld [vmem:[%s300 + $0xf8] sm:$0xf]
      %v550 = vld [vmem:[%s300 + $0xfc] sm:$0xf]
      %v551 = vld [vmem:[%s300 + $0x100] sm:$0xf]
      %v552 = vld [vmem:[%s300 + $0x104] sm:$0xf]
      %v553 = vld [vmem:[%s300 + $0x108] sm:$0xf]
      %v554 = vld [vmem:[%s300 + $0x10c] sm:$0xf]
      %v555 = vld [vmem:[%s300 + $0x110] sm:$0xf]
      %v556 = vld [vmem:[%s300 + $0x114] sm:$0xf]
      %v557 = vld [vmem:[%s300 + $0x118] sm:$0xf]
      %v558 = vld [vmem:[%s300 + $0x11c] sm:$0xf]
      %v559 = vld [vmem:[%s300 + $0x120] sm:$0xf]
      %v560 = vld [vmem:[%s300 + $0x124] sm:$0xf]
      %v561 = vld [vmem:[%s300 + $0x128] sm:$0xf]
      %v562 = vld [vmem:[%s300 + $0x12c] sm:$0xf]
      %v563 = vld [vmem:[%s300 + $0x130] sm:$0xf]
      %v564 = vld [vmem:[%s300 + $0x134] sm:$0xf]
      %v565 = vld [vmem:[%s300 + $0x138] sm:$0xf]
      %v566 = vld [vmem:[%s300 + $0x13c] sm:$0xf]
      %v567 = vld [vmem:[%s300 + $0x140] sm:$0xf]
      %v568 = vld [vmem:[%s300 + $0x144] sm:$0xf]
      %v569 = vld [vmem:[%s300 + $0x148] sm:$0xf]
      %v570 = vld [vmem:[%s300 + $0x14c] sm:$0xf]
      %v571 = vld [vmem:[%s300 + $0x150] sm:$0xf]
      %v572 = vld [vmem:[%s300 + $0x154] sm:$0xf]
      %v573 = vld [vmem:[%s300 + $0x158] sm:$0xf]
      %v574 = vld [vmem:[%s300 + $0x15c] sm:$0xf]
      %v575 = vld [vmem:[%s300 + $0x160] sm:$0xf]
      %v576 = vld [vmem:[%s300 + $0x164] sm:$0xf]
      %v577 = vld [vmem:[%s300 + $0x168] sm:$0xf]
      %v578 = vld [vmem:[%s300 + $0x16c] sm:$0xf]
      %v579 = vld [vmem:[%s300 + $0x170] sm:$0xf]
      %v580 = vld [vmem:[%s300 + $0x174] sm:$0xf]
      %v581 = vld [vmem:[%s300 + $0x178] sm:$0xf]
      %v582 = vld [vmem:[%s300 + $0x17c] sm:$0xf]
      %v583 = vld [vmem:[%s300 + $0x180] sm:$0xf]
      %v584 = vld [vmem:[%s300 + $0x184] sm:$0xf]
      %v585 = vld [vmem:[%s300 + $0x188] sm:$0xf]
      %v586 = vld [vmem:[%s300 + $0x18c] sm:$0xf]
      %v587 = vld [vmem:[%s300 + $0x190] sm:$0xf]
      %v588 = vld [vmem:[%s300 + $0x194] sm:$0xf]
      %v589 = vld [vmem:[%s300 + $0x198] sm:$0xf]
      %v590 = vld [vmem:[%s300 + $0x19c] sm:$0xf]
      %v591 = vld [vmem:[%s300 + $0x1a0] sm:$0xf]
      %v592 = vld [vmem:[%s300 + $0x1a4] sm:$0xf]
      %v593 = vld [vmem:[%s300 + $0x1a8] sm:$0xf]
      %v594 = vld [vmem:[%s300 + $0x1ac] sm:$0xf]
      %v595 = vld [vmem:[%s300 + $0x1b0] sm:$0xf]
      %v596 = vld [vmem:[%s300 + $0x1b4] sm:$0xf]
      %v597 = vld [vmem:[%s300 + $0x1b8] sm:$0xf]
      %v598 = vld [vmem:[%s300 + $0x1bc] sm:$0xf]
      %v599 = vld [vmem:[%s300 + $0x1c0] sm:$0xf]
      %v600 = vld [vmem:[%s300 + $0x1c4] sm:$0xf]
      %v601 = vld [vmem:[%s300 + $0x1c8] sm:$0xf]
      %v602 = vld [vmem:[%s300 + $0x1cc] sm:$0xf]
      %v603 = vld [vmem:[%s300 + $0x1d0] sm:$0xf]
      %v604 = vld [vmem:[%s300 + $0x1d4] sm:$0xf]
      %v605 = vld [vmem:[%s300 + $0x1d8] sm:$0xf]
      %v606 = vld [vmem:[%s300 + $0x1dc] sm:$0xf]
      %v607 = vld [vmem:[%s300 + $0x1e0] sm:$0xf]
      %v608 = vld [vmem:[%s300 + $0x1e4] sm:$0xf]
      %v609 = vld [vmem:[%s300 + $0x1e8] sm:$0xf]
      %v610 = vld [vmem:[%s300 + $0x1ec] sm:$0xf]
      %v611 = vld [vmem:[%s300 + $0x1f0] sm:$0xf]
      %v612 = vld [vmem:[%s300 + $0x1f4] sm:$0xf]
      %v613 = vld [vmem:[%s300 + $0x1f8] sm:$0xf]
      %v614 = vld [vmem:[%s300 + $0x1fc] sm:$0xf]
      %v615 = vld [vmem:[%s300 + $0x200] sm:$0xf]
      %v616 = vld [vmem:[%s300 + $0x204] sm:$0xf]
      %v617 = vld [vmem:[%s300 + $0x208] sm:$0xf]
      %v618 = vld [vmem:[%s300 + $0x20c] sm:$0xf]
      %v619 = vld [vmem:[%s300 + $0x210] sm:$0xf]
      %v620 = vld [vmem:[%s300 + $0x214] sm:$0xf]
      %v621 = vld [vmem:[%s300 + $0x218] sm:$0xf]
      %v622 = vld [vmem:[%s300 + $0x21c] sm:$0xf]
      %v623 = vld [vmem:[%s300 + $0x220] sm:$0xf]
      %v624 = vld [vmem:[%s300 + $0x224] sm:$0xf]
      %v625 = vld [vmem:[%s300 + $0x228] sm:$0xf]
      %v626 = vld [vmem:[%s300 + $0x22c] sm:$0xf]
      %v627 = vld [vmem:[%s300 + $0x230] sm:$0xf]
      %v628 = vld [vmem:[%s300 + $0x234] sm:$0xf]
      %v629 = vld [vmem:[%s300 + $0x238] sm:$0xf]
      %v630 = vld [vmem:[%s300 + $0x23c] sm:$0xf]
      %v631 = vld [vmem:[%s296] sm:$0xf]
      %v632 = vld [vmem:[%s296 + $0x8] sm:$0xf]
      %v633 = vld [vmem:[%s296 + $0x10] sm:$0xf]
      %v634 = vld [vmem:[%s296 + $0x18] sm:$0xf]
      %v635 = vld [vmem:[%s296 + $0x20] sm:$0xf]
      %v636 = vld [vmem:[%s296 + $0x28] sm:$0xf]
      %v637 = vld [vmem:[%s296 + $0x30] sm:$0xf]
      %v638 = vld [vmem:[%s296 + $0x38] sm:$0xf]
      %v639 = vld [vmem:[%s304] sm:$0xf]
      %v640 = vld [vmem:[%s304 + $0x4] sm:$0xf]
      %v649 = vunpack.c.l.b16 %v631
      %v650 = vunpack.c.l.b16 %v632
      %v651 = vunpack.c.l.b16 %v633
      %v652 = vunpack.c.l.b16 %v634
      %v653 = vunpack.c.l.b16 %v635
      %v654 = vunpack.c.l.b16 %v636
      %v655 = vunpack.c.l.b16 %v637
      %v656 = vunpack.c.l.b16 %v638
      %v657 = vpack.c.b16 %v650, %v649
      %v658 = vpack.c.b16 %v652, %v651
      %v659 = vpack.c.b16 %v654, %v653
      %v660 = vpack.c.b16 %v656, %v655
      %v663 = vunpack.c.l.b16 %v639
      %v664 = vunpack.c.l.b16 %v640
      %v665 = vpack.c.b16 %v664, %v663
      %vm667 = vcmask 130048
      %v669 = vsel %vm667, %v657, 0
      %v672 = vsel %vm667, %v658, 0
      %v675 = vsel %vm667, %v659, 0
      %v678 = vsel %vm667, %v660, 0
      %680 = vmatprep.subr.bf16.mxu0 0
      %681 = vmatpush1.bf16.msra.mxu0 0
      %682 = vmatprep.subr.bf16.mxu0 0
      %683 = vmatpush1.bf16.msra.mxu0 0
      %684 = vmatprep.subr.bf16.mxu0 0
      %685 = vmatpush1.bf16.msra.mxu0 0
      %686 = vmatprep.subr.bf16.mxu0 0
      %687 = vmatpush1.bf16.msra.mxu0 0
      %688 = vmatprep.subr.bf16.mxu0 0
      %689 = vmatpush1.bf16.msra.mxu0 0
      %690 = vmatprep.subr.bf16.mxu0 0
      %691 = vmatpush1.bf16.msra.mxu0 0
      %692 = vmatprep.subr.bf16.mxu0 0
      %693 = vmatpush1.bf16.msra.mxu0 0
      %694 = vmatprep.subr.bf16.mxu0 0
      %695 = vmatpush1.bf16.msra.mxu0 %v665
      %696 = vmatprep.subr.bf16.mxu0 0
      %697 = vmatpush2.bf16.msra.mxu0 0
      %698 = vmatprep.subr.bf16.mxu0 0
      %699 = vmatpush2.bf16.msra.mxu0 0
      %700 = vmatprep.subr.bf16.mxu0 0
      %701 = vmatpush2.bf16.msra.mxu0 0
      %702 = vmatprep.subr.bf16.mxu0 0
      %703 = vmatpush2.bf16.msra.mxu0 0
      %704 = vmatprep.subr.bf16.mxu0 0
      %705 = vmatpush2.bf16.msra.mxu0 0
      %706 = vmatprep.subr.bf16.mxu0 0
      %707 = vmatpush2.bf16.msra.mxu0 0
      %708 = vmatprep.subr.bf16.mxu0 0
      %709 = vmatpush2.bf16.msra.mxu0 0
      %710 = vmatprep.subr.bf16.mxu0 0
      %711 = vmatpush2.bf16.msra.mxu0 0
      %712 = vmatprep.mubr.bf16.mxu0 0
      %713 = vmatmul.mubr.bf16.gmra.mxu0 %v669
      %v714 = vpop.f32.mrf.mxu0
      %v715 = vadd.f32 0.0, %v714
      %v716 = vpop.f32.mrf.mxu0
      %v717 = vpop.f32.mrf.mxu0
      %v718 = vadd.f32 0.0, %v717
      %v719 = vpop.f32.mrf.mxu0
      %720 = vmatprep.mubr.bf16.mxu0 0
      %721 = vmatmul.mubr.bf16.gmra.mxu0 %v672
      %v722 = vpop.f32.mrf.mxu0
      %v723 = vadd.f32 0.0, %v722
      %v724 = vpop.f32.mrf.mxu0
      %v725 = vpop.f32.mrf.mxu0
      %v726 = vadd.f32 0.0, %v725
      %v727 = vpop.f32.mrf.mxu0
      %728 = vmatprep.mubr.bf16.mxu0 0
      %729 = vmatmul.mubr.bf16.gmra.mxu0 %v675
      %v730 = vpop.f32.mrf.mxu0
      %v731 = vadd.f32 0.0, %v730
      %v732 = vpop.f32.mrf.mxu0
      %v733 = vpop.f32.mrf.mxu0
      %v734 = vadd.f32 0.0, %v733
      %v735 = vpop.f32.mrf.mxu0
      %736 = vmatprep.mubr.bf16.mxu0 0
      %737 = vmatmul.mubr.bf16.gmra.mxu0 %v678
      %v738 = vpop.f32.mrf.mxu0
      %v739 = vadd.f32 0.0, %v738
      %v740 = vpop.f32.mrf.mxu0
      %v741 = vpop.f32.mrf.mxu0
      %v742 = vadd.f32 0.0, %v741
      %v743 = vpop.f32.mrf.mxu0
      %744 = vdwg.mxu0
      %v745 = vpack.c.b16 %v355, %v353
      %v746 = vpack.c.b16 %v469, %v467
      %v747 = vpack.c.b16 %v470, %v468
      %v748 = vpack.c.b16 %v357, %v355
      %v749 = vpack.c.b16 %v471, %v469
      %v750 = vpack.c.b16 %v472, %v470
      %v751 = vpack.c.b16 %v359, %v357
      %v752 = vpack.c.b16 %v473, %v471
      %v753 = vpack.c.b16 %v474, %v472
      %v754 = vpack.c.b16 %v361, %v359
      %v755 = vpack.c.b16 %v475, %v473
      %v756 = vpack.c.b16 %v476, %v474
      %v757 = vpack.c.b16 %v363, %v361
      %v758 = vpack.c.b16 %v477, %v475
      %v759 = vpack.c.b16 %v478, %v476
      %v760 = vpack.c.b16 %v365, %v363
      %v761 = vpack.c.b16 %v479, %v477
      %v762 = vpack.c.b16 %v480, %v478
      %v763 = vpack.c.b16 %v367, %v365
      %v764 = vpack.c.b16 %v481, %v479
      %v765 = vpack.c.b16 %v482, %v480
      %v766 = vpack.c.b16 %v443, %v367
      %v767 = vpack.c.b16 %v483, %v481
      %v768 = vpack.c.b16 %v484, %v482
      %v769 = vpack.c.b16 %v456, %v443
      %v770 = vpack.c.b16 %v485, %v483
      %v771 = vpack.c.b16 %v486, %v484
      %v943 = vunpack.c.l.b16 %v487
      %v944 = vunpack.c.l.b16 %v488
      %v945 = vunpack.c.l.b16 %v489
      %v946 = vunpack.c.l.b16 %v490
      %v947 = vunpack.c.l.b16 %v491
      %v948 = vunpack.c.l.b16 %v492
      %v949 = vunpack.c.l.b16 %v493
      %v950 = vunpack.c.l.b16 %v494
      %v951 = vunpack.c.l.b16 %v495
      %v952 = vunpack.c.l.b16 %v496
      %v953 = vunpack.c.l.b16 %v497
      %v954 = vunpack.c.l.b16 %v498
      %v955 = vunpack.c.l.b16 %v499
      %v956 = vunpack.c.l.b16 %v500
      %v957 = vunpack.c.l.b16 %v501
      %v958 = vunpack.c.l.b16 %v502
      %v959 = vunpack.c.l.b16 %v503
      %v960 = vunpack.c.l.b16 %v504
      %v961 = vunpack.c.l.b16 %v505
      %v962 = vunpack.c.l.b16 %v506
      %v963 = vunpack.c.l.b16 %v507
      %v964 = vunpack.c.l.b16 %v508
      %v965 = vunpack.c.l.b16 %v509
      %v966 = vunpack.c.l.b16 %v510
      %v967 = vunpack.c.l.b16 %v511
      %v968 = vunpack.c.l.b16 %v512
      %v969 = vunpack.c.l.b16 %v513
      %v970 = vunpack.c.l.b16 %v514
      %v971 = vunpack.c.l.b16 %v515
      %v972 = vunpack.c.l.b16 %v516
      %v973 = vunpack.c.l.b16 %v517
      %v974 = vunpack.c.l.b16 %v518
      %v975 = vunpack.c.l.b16 %v519
      %v976 = vunpack.c.l.b16 %v520
      %v977 = vunpack.c.l.b16 %v521
      %v978 = vunpack.c.l.b16 %v522
      %v979 = vunpack.c.l.b16 %v523
      %v980 = vunpack.c.l.b16 %v524
      %v981 = vunpack.c.l.b16 %v525
      %v982 = vunpack.c.l.b16 %v526
      %v983 = vunpack.c.l.b16 %v527
      %v984 = vunpack.c.l.b16 %v528
      %v985 = vunpack.c.l.b16 %v529
      %v986 = vunpack.c.l.b16 %v530
      %v987 = vunpack.c.l.b16 %v531
      %v988 = vunpack.c.l.b16 %v532
      %v989 = vunpack.c.l.b16 %v533
      %v990 = vunpack.c.l.b16 %v534
      %v991 = vunpack.c.l.b16 %v535
      %v992 = vunpack.c.l.b16 %v536
      %v993 = vunpack.c.l.b16 %v537
      %v994 = vunpack.c.l.b16 %v538
      %v995 = vunpack.c.l.b16 %v539
      %v996 = vunpack.c.l.b16 %v540
      %v997 = vunpack.c.l.b16 %v541
      %v998 = vunpack.c.l.b16 %v542
      %v999 = vunpack.c.l.b16 %v543
      %v1000 = vunpack.c.l.b16 %v544
      %v1001 = vunpack.c.l.b16 %v545
      %v1002 = vunpack.c.l.b16 %v546
      %v1003 = vunpack.c.l.b16 %v547
      %v1004 = vunpack.c.l.b16 %v548
      %v1005 = vunpack.c.l.b16 %v549
      %v1006 = vunpack.c.l.b16 %v550
      %v1007 = vunpack.c.l.b16 %v551
      %v1008 = vunpack.c.l.b16 %v552
      %v1009 = vunpack.c.l.b16 %v553
      %v1010 = vunpack.c.l.b16 %v554
      %v1011 = vunpack.c.l.b16 %v555
      %v1012 = vunpack.c.l.b16 %v556
      %v1013 = vunpack.c.l.b16 %v557
      %v1014 = vunpack.c.l.b16 %v558
      %v1015 = vunpack.c.l.b16 %v559
      %v1016 = vunpack.c.l.b16 %v560
      %v1017 = vunpack.c.l.b16 %v561
      %v1018 = vunpack.c.l.b16 %v562
      %v1019 = vunpack.c.l.b16 %v563
      %v1020 = vunpack.c.l.b16 %v564
      %v1021 = vunpack.c.l.b16 %v565
      %v1022 = vunpack.c.l.b16 %v566
      %v1023 = vunpack.c.l.b16 %v567
      %v1024 = vunpack.c.l.b16 %v568
      %v1025 = vunpack.c.l.b16 %v569
      %v1026 = vunpack.c.l.b16 %v570
      %v1027 = vunpack.c.l.b16 %v571
      %v1028 = vunpack.c.l.b16 %v572
      %v1029 = vunpack.c.l.b16 %v573
      %v1030 = vunpack.c.l.b16 %v574
      %v1031 = vunpack.c.l.b16 %v575
      %v1032 = vunpack.c.l.b16 %v576
      %v1033 = vunpack.c.l.b16 %v577
      %v1034 = vunpack.c.l.b16 %v578
      %v1035 = vunpack.c.l.b16 %v579
      %v1036 = vunpack.c.l.b16 %v580
      %v1037 = vunpack.c.l.b16 %v581
      %v1038 = vunpack.c.l.b16 %v582
      %v1039 = vunpack.c.l.b16 %v583
      %v1040 = vunpack.c.l.b16 %v584
      %v1041 = vunpack.c.l.b16 %v585
      %v1042 = vunpack.c.l.b16 %v586
      %v1043 = vunpack.c.l.b16 %v587
      %v1044 = vunpack.c.l.b16 %v588
      %v1045 = vunpack.c.l.b16 %v589
      %v1046 = vunpack.c.l.b16 %v590
      %v1047 = vunpack.c.l.b16 %v591
      %v1048 = vunpack.c.l.b16 %v592
      %v1049 = vunpack.c.l.b16 %v593
      %v1050 = vunpack.c.l.b16 %v594
      %v1051 = vunpack.c.l.b16 %v595
      %v1052 = vunpack.c.l.b16 %v596
      %v1053 = vunpack.c.l.b16 %v597
      %v1054 = vunpack.c.l.b16 %v598
      %v1055 = vunpack.c.l.b16 %v599
      %v1056 = vunpack.c.l.b16 %v600
      %v1057 = vunpack.c.l.b16 %v601
      %v1058 = vunpack.c.l.b16 %v602
      %v1059 = vunpack.c.l.b16 %v603
      %v1060 = vunpack.c.l.b16 %v604
      %v1061 = vunpack.c.l.b16 %v605
      %v1062 = vunpack.c.l.b16 %v606
      %v1063 = vunpack.c.l.b16 %v607
      %v1064 = vunpack.c.l.b16 %v608
      %v1065 = vunpack.c.l.b16 %v609
      %v1066 = vunpack.c.l.b16 %v610
      %v1067 = vunpack.c.l.b16 %v611
      %v1068 = vunpack.c.l.b16 %v612
      %v1069 = vunpack.c.l.b16 %v613
      %v1070 = vunpack.c.l.b16 %v614
      %v1071 = vunpack.c.l.b16 %v615
      %v1072 = vunpack.c.l.b16 %v616
      %v1073 = vunpack.c.l.b16 %v617
      %v1074 = vunpack.c.l.b16 %v618
      %v1075 = vunpack.c.l.b16 %v619
      %v1076 = vunpack.c.l.b16 %v620
      %v1077 = vunpack.c.l.b16 %v621
      %v1078 = vunpack.c.l.b16 %v622
      %v1079 = vunpack.c.l.b16 %v623
      %v1080 = vunpack.c.l.b16 %v624
      %v1081 = vunpack.c.l.b16 %v625
      %v1082 = vunpack.c.l.b16 %v626
      %v1083 = vunpack.c.l.b16 %v627
      %v1084 = vunpack.c.l.b16 %v628
      %v1085 = vunpack.c.l.b16 %v629
      %v1086 = vunpack.c.l.b16 %v630
      %v1087 = vpack.c.b16 %v944, %v943
      %v1088 = vpack.c.b16 %v946, %v945
      %v1089 = vpack.c.b16 %v948, %v947
      %v1090 = vpack.c.b16 %v950, %v949
      %v1091 = vpack.c.b16 %v952, %v951
      %v1092 = vpack.c.b16 %v954, %v953
      %v1093 = vpack.c.b16 %v956, %v955
      %v1094 = vpack.c.b16 %v958, %v957
      %v1095 = vpack.c.b16 %v960, %v959
      %v1096 = vpack.c.b16 %v962, %v961
      %v1097 = vpack.c.b16 %v964, %v963
      %v1098 = vpack.c.b16 %v966, %v965
      %v1099 = vpack.c.b16 %v968, %v967
      %v1100 = vpack.c.b16 %v970, %v969
      %v1101 = vpack.c.b16 %v972, %v971
      %v1102 = vpack.c.b16 %v974, %v973
      %v1103 = vpack.c.b16 %v976, %v975
      %v1104 = vpack.c.b16 %v978, %v977
      %v1105 = vpack.c.b16 %v980, %v979
      %v1106 = vpack.c.b16 %v982, %v981
      %v1107 = vpack.c.b16 %v984, %v983
      %v1108 = vpack.c.b16 %v986, %v985
      %v1109 = vpack.c.b16 %v988, %v987
      %v1110 = vpack.c.b16 %v990, %v989
      %v1111 = vpack.c.b16 %v992, %v991
      %v1112 = vpack.c.b16 %v994, %v993
      %v1113 = vpack.c.b16 %v996, %v995
      %v1114 = vpack.c.b16 %v998, %v997
      %v1115 = vpack.c.b16 %v1000, %v999
      %v1116 = vpack.c.b16 %v1002, %v1001
      %v1117 = vpack.c.b16 %v1004, %v1003
      %v1118 = vpack.c.b16 %v1006, %v1005
      %v1119 = vpack.c.b16 %v1008, %v1007
      %v1120 = vpack.c.b16 %v1010, %v1009
      %v1121 = vpack.c.b16 %v1012, %v1011
      %v1122 = vpack.c.b16 %v1014, %v1013
      %v1123 = vpack.c.b16 %v1016, %v1015
      %v1124 = vpack.c.b16 %v1018, %v1017
      %v1125 = vpack.c.b16 %v1020, %v1019
      %v1126 = vpack.c.b16 %v1022, %v1021
      %v1127 = vpack.c.b16 %v1024, %v1023
      %v1128 = vpack.c.b16 %v1026, %v1025
      %v1129 = vpack.c.b16 %v1028, %v1027
      %v1130 = vpack.c.b16 %v1030, %v1029
      %v1131 = vpack.c.b16 %v1032, %v1031
      %v1132 = vpack.c.b16 %v1034, %v1033
      %v1133 = vpack.c.b16 %v1036, %v1035
      %v1134 = vpack.c.b16 %v1038, %v1037
      %v1135 = vpack.c.b16 %v1040, %v1039
      %v1136 = vpack.c.b16 %v1042, %v1041
      %v1137 = vpack.c.b16 %v1044, %v1043
      %v1138 = vpack.c.b16 %v1046, %v1045
      %v1139 = vpack.c.b16 %v1048, %v1047
      %v1140 = vpack.c.b16 %v1050, %v1049
      %v1141 = vpack.c.b16 %v1052, %v1051
      %v1142 = vpack.c.b16 %v1054, %v1053
      %v1143 = vpack.c.b16 %v1056, %v1055
      %v1144 = vpack.c.b16 %v1058, %v1057
      %v1145 = vpack.c.b16 %v1060, %v1059
      %v1146 = vpack.c.b16 %v1062, %v1061
      %v1147 = vpack.c.b16 %v1064, %v1063
      %v1148 = vpack.c.b16 %v1066, %v1065
      %v1149 = vpack.c.b16 %v1068, %v1067
      %v1150 = vpack.c.b16 %v1070, %v1069
      %v1151 = vpack.c.b16 %v1072, %v1071
      %v1152 = vpack.c.b16 %v1074, %v1073
      %v1153 = vpack.c.b16 %v1076, %v1075
      %v1154 = vpack.c.b16 %v1078, %v1077
      %v1155 = vpack.c.b16 %v1080, %v1079
      %v1156 = vpack.c.b16 %v1082, %v1081
      %v1157 = vpack.c.b16 %v1084, %v1083
      %v1158 = vpack.c.b16 %v1086, %v1085
      %1231 = vmatprep.subr.bf16.mxu0 0
      %1232 = vmatpush1.bf16.msra.mxu0 %v1094
      %1233 = vmatprep.subr.bf16.mxu0 0
      %1234 = vmatpush1.bf16.msra.mxu0 %v1093
      %1235 = vmatprep.subr.bf16.mxu0 0
      %1236 = vmatpush1.bf16.msra.mxu0 %v1092
      %1237 = vmatprep.subr.bf16.mxu0 0
      %1238 = vmatpush1.bf16.msra.mxu0 %v1091
      %1239 = vmatprep.subr.bf16.mxu0 0
      %1240 = vmatpush1.bf16.msra.mxu0 %v1090
      %1241 = vmatprep.subr.bf16.mxu0 0
      %1242 = vmatpush1.bf16.msra.mxu0 %v1089
      %1243 = vmatprep.subr.bf16.mxu0 0
      %1244 = vmatpush1.bf16.msra.mxu0 %v1088
      %1245 = vmatprep.subr.bf16.mxu0 0
      %1246 = vmatpush1.bf16.msra.mxu0 %v1087
      %1247 = vmatprep.subr.bf16.mxu0 0
      %1248 = vmatpush2.bf16.msra.mxu0 %v1102
      %1249 = vmatprep.subr.bf16.mxu0 0
      %1250 = vmatpush2.bf16.msra.mxu0 %v1101
      %1251 = vmatprep.subr.bf16.mxu0 0
      %1252 = vmatpush2.bf16.msra.mxu0 %v1100
      %1253 = vmatprep.subr.bf16.mxu0 0
      %1254 = vmatpush2.bf16.msra.mxu0 %v1099
      %1255 = vmatprep.subr.bf16.mxu0 0
      %1256 = vmatpush2.bf16.msra.mxu0 %v1098
      %1257 = vmatprep.subr.bf16.mxu0 0
      %1258 = vmatpush2.bf16.msra.mxu0 %v1097
      %1259 = vmatprep.subr.bf16.mxu0 0
      %1260 = vmatpush2.bf16.msra.mxu0 %v1096
      %1261 = vmatprep.subr.bf16.mxu0 0
      %1262 = vmatpush2.bf16.msra.mxu0 %v1095
      %1263 = vmatprep.mubr.bf16.mxu0 %v746
      %1264 = vmatmul.mubr.bf16.gmra.mxu0 %v745
      %v1265 = vpop.f32.mrf.mxu0
      %v1266 = vadd.f32 %v715, %v1265
      %v1267 = vpop.f32.mrf.mxu0
      %v1268 = vpop.f32.mrf.mxu0
      %v1269 = vadd.f32 %v718, %v1268
      %v1270 = vpop.f32.mrf.mxu0
      %1271 = vmatprep.mubr.bf16.mxu0 %v752
      %1272 = vmatmul.mubr.bf16.gmra.mxu0 %v751
      %v1273 = vpop.f32.mrf.mxu0
      %v1274 = vadd.f32 %v723, %v1273
      %v1275 = vpop.f32.mrf.mxu0
      %v1276 = vpop.f32.mrf.mxu0
      %v1277 = vadd.f32 %v726, %v1276
      %v1278 = vpop.f32.mrf.mxu0
      %1279 = vmatprep.mubr.bf16.mxu0 %v758
      %1280 = vmatmul.mubr.bf16.gmra.mxu0 %v757
      %v1281 = vpop.f32.mrf.mxu0
      %v1282 = vadd.f32 %v731, %v1281
      %v1283 = vpop.f32.mrf.mxu0
      %v1284 = vpop.f32.mrf.mxu0
      %v1285 = vadd.f32 %v734, %v1284
      %v1286 = vpop.f32.mrf.mxu0
      %1287 = vmatprep.mubr.bf16.mxu0 %v764
      %1288 = vmatmul.mubr.bf16.gmra.mxu0 %v763
      %v1289 = vpop.f32.mrf.mxu0
      %v1290 = vadd.f32 %v739, %v1289
      %v1291 = vpop.f32.mrf.mxu0
      %v1292 = vpop.f32.mrf.mxu0
      %v1293 = vadd.f32 %v742, %v1292
      %v1294 = vpop.f32.mrf.mxu0
      %1295 = vdwg.mxu0
      %1296 = vmatprep.subr.bf16.mxu0 0
      %1297 = vmatpush1.bf16.msra.mxu0 %v1110
      %1298 = vmatprep.subr.bf16.mxu0 0
      %1299 = vmatpush1.bf16.msra.mxu0 %v1109
      %1300 = vmatprep.subr.bf16.mxu0 0
      %1301 = vmatpush1.bf16.msra.mxu0 %v1108
      %1302 = vmatprep.subr.bf16.mxu0 0
      %1303 = vmatpush1.bf16.msra.mxu0 %v1107
      %1304 = vmatprep.subr.bf16.mxu0 0
      %1305 = vmatpush1.bf16.msra.mxu0 %v1106
      %1306 = vmatprep.subr.bf16.mxu0 0
      %1307 = vmatpush1.bf16.msra.mxu0 %v1105
      %1308 = vmatprep.subr.bf16.mxu0 0
      %1309 = vmatpush1.bf16.msra.mxu0 %v1104
      %1310 = vmatprep.subr.bf16.mxu0 0
      %1311 = vmatpush1.bf16.msra.mxu0 %v1103
      %1312 = vmatprep.subr.bf16.mxu0 0
      %1313 = vmatpush2.bf16.msra.mxu0 %v1118
      %1314 = vmatprep.subr.bf16.mxu0 0
      %1315 = vmatpush2.bf16.msra.mxu0 %v1117
      %1316 = vmatprep.subr.bf16.mxu0 0
      %1317 = vmatpush2.bf16.msra.mxu0 %v1116
      %1318 = vmatprep.subr.bf16.mxu0 0
      %1319 = vmatpush2.bf16.msra.mxu0 %v1115
      %1320 = vmatprep.subr.bf16.mxu0 0
      %1321 = vmatpush2.bf16.msra.mxu0 %v1114
      %1322 = vmatprep.subr.bf16.mxu0 0
      %1323 = vmatpush2.bf16.msra.mxu0 %v1113
      %1324 = vmatprep.subr.bf16.mxu0 0
      %1325 = vmatpush2.bf16.msra.mxu0 %v1112
      %1326 = vmatprep.subr.bf16.mxu0 0
      %1327 = vmatpush2.bf16.msra.mxu0 %v1111
      %1328 = vmatprep.mubr.bf16.mxu0 %v748
      %1329 = vmatmul.mubr.bf16.gmra.mxu0 %v747
      %v1330 = vpop.f32.mrf.mxu0
      %v1331 = vadd.f32 %v1266, %v1330
      %v1332 = vpop.f32.mrf.mxu0
      %v1333 = vpop.f32.mrf.mxu0
      %v1334 = vadd.f32 %v1269, %v1333
      %v1335 = vpop.f32.mrf.mxu0
      %1336 = vmatprep.mubr.bf16.mxu0 %v754
      %1337 = vmatmul.mubr.bf16.gmra.mxu0 %v753
      %v1338 = vpop.f32.mrf.mxu0
      %v1339 = vadd.f32 %v1274, %v1338
      %v1340 = vpop.f32.mrf.mxu0
      %v1341 = vpop.f32.mrf.mxu0
      %v1342 = vadd.f32 %v1277, %v1341
      %v1343 = vpop.f32.mrf.mxu0
      %1344 = vmatprep.mubr.bf16.mxu0 %v760
      %1345 = vmatmul.mubr.bf16.gmra.mxu0 %v759
      %v1346 = vpop.f32.mrf.mxu0
      %v1347 = vadd.f32 %v1282, %v1346
      %v1348 = vpop.f32.mrf.mxu0
      %v1349 = vpop.f32.mrf.mxu0
      %v1350 = vadd.f32 %v1285, %v1349
      %v1351 = vpop.f32.mrf.mxu0
      %1352 = vmatprep.mubr.bf16.mxu0 %v766
      %1353 = vmatmul.mubr.bf16.gmra.mxu0 %v765
      %v1354 = vpop.f32.mrf.mxu0
      %v1355 = vadd.f32 %v1290, %v1354
      %v1356 = vpop.f32.mrf.mxu0
      %v1357 = vpop.f32.mrf.mxu0
      %v1358 = vadd.f32 %v1293, %v1357
      %v1359 = vpop.f32.mrf.mxu0
      %1360 = vdwg.mxu0
      %1361 = vmatprep.subr.bf16.mxu0 0
      %1362 = vmatpush1.bf16.msra.mxu0 %v1126
      %1363 = vmatprep.subr.bf16.mxu0 0
      %1364 = vmatpush1.bf16.msra.mxu0 %v1125
      %1365 = vmatprep.subr.bf16.mxu0 0
      %1366 = vmatpush1.bf16.msra.mxu0 %v1124
      %1367 = vmatprep.subr.bf16.mxu0 0
      %1368 = vmatpush1.bf16.msra.mxu0 %v1123
      %1369 = vmatprep.subr.bf16.mxu0 0
      %1370 = vmatpush1.bf16.msra.mxu0 %v1122
      %1371 = vmatprep.subr.bf16.mxu0 0
      %1372 = vmatpush1.bf16.msra.mxu0 %v1121
      %1373 = vmatprep.subr.bf16.mxu0 0
      %1374 = vmatpush1.bf16.msra.mxu0 %v1120
      %1375 = vmatprep.subr.bf16.mxu0 0
      %1376 = vmatpush1.bf16.msra.mxu0 %v1119
      %1377 = vmatprep.subr.bf16.mxu0 0
      %1378 = vmatpush2.bf16.msra.mxu0 %v1134
      %1379 = vmatprep.subr.bf16.mxu0 0
      %1380 = vmatpush2.bf16.msra.mxu0 %v1133
      %1381 = vmatprep.subr.bf16.mxu0 0
      %1382 = vmatpush2.bf16.msra.mxu0 %v1132
      %1383 = vmatprep.subr.bf16.mxu0 0
      %1384 = vmatpush2.bf16.msra.mxu0 %v1131
      %1385 = vmatprep.subr.bf16.mxu0 0
      %1386 = vmatpush2.bf16.msra.mxu0 %v1130
      %1387 = vmatprep.subr.bf16.mxu0 0
      %1388 = vmatpush2.bf16.msra.mxu0 %v1129
      %1389 = vmatprep.subr.bf16.mxu0 0
      %1390 = vmatpush2.bf16.msra.mxu0 %v1128
      %1391 = vmatprep.subr.bf16.mxu0 0
      %1392 = vmatpush2.bf16.msra.mxu0 %v1127
      %1393 = vmatprep.mubr.bf16.mxu0 %v750
      %1394 = vmatmul.mubr.bf16.gmra.mxu0 %v749
      %v1395 = vpop.f32.mrf.mxu0
      %v1396 = vadd.f32 %v1331, %v1395
      %v1397 = vpop.f32.mrf.mxu0
      %v1398 = vpop.f32.mrf.mxu0
      %v1399 = vadd.f32 %v1334, %v1398
      %v1400 = vpop.f32.mrf.mxu0
      %1401 = vmatprep.mubr.bf16.mxu0 %v756
      %1402 = vmatmul.mubr.bf16.gmra.mxu0 %v755
      %v1403 = vpop.f32.mrf.mxu0
      %v1404 = vadd.f32 %v1339, %v1403
      %v1405 = vpop.f32.mrf.mxu0
      %v1406 = vpop.f32.mrf.mxu0
      %v1407 = vadd.f32 %v1342, %v1406
      %v1408 = vpop.f32.mrf.mxu0
      %1409 = vmatprep.mubr.bf16.mxu0 %v762
      %1410 = vmatmul.mubr.bf16.gmra.mxu0 %v761
      %v1411 = vpop.f32.mrf.mxu0
      %v1412 = vadd.f32 %v1347, %v1411
      %v1413 = vpop.f32.mrf.mxu0
      %v1414 = vpop.f32.mrf.mxu0
      %v1415 = vadd.f32 %v1350, %v1414
      %v1416 = vpop.f32.mrf.mxu0
      %1417 = vmatprep.mubr.bf16.mxu0 %v768
      %1418 = vmatmul.mubr.bf16.gmra.mxu0 %v767
      %v1419 = vpop.f32.mrf.mxu0
      %v1420 = vadd.f32 %v1355, %v1419
      %v1421 = vpop.f32.mrf.mxu0
      %v1422 = vpop.f32.mrf.mxu0
      %v1423 = vadd.f32 %v1358, %v1422
      %v1424 = vpop.f32.mrf.mxu0
      %1425 = vdwg.mxu0
      %1426 = vmatprep.subr.bf16.mxu0 0
      %1427 = vmatpush1.bf16.msra.mxu0 %v1142
      %1428 = vmatprep.subr.bf16.mxu0 0
      %1429 = vmatpush1.bf16.msra.mxu0 %v1141
      %1430 = vmatprep.subr.bf16.mxu0 0
      %1431 = vmatpush1.bf16.msra.mxu0 %v1140
      %1432 = vmatprep.subr.bf16.mxu0 0
      %1433 = vmatpush1.bf16.msra.mxu0 %v1139
      %1434 = vmatprep.subr.bf16.mxu0 0
      %1435 = vmatpush1.bf16.msra.mxu0 %v1138
      %1436 = vmatprep.subr.bf16.mxu0 0
      %1437 = vmatpush1.bf16.msra.mxu0 %v1137
      %1438 = vmatprep.subr.bf16.mxu0 0
      %1439 = vmatpush1.bf16.msra.mxu0 %v1136
      %1440 = vmatprep.subr.bf16.mxu0 0
      %1441 = vmatpush1.bf16.msra.mxu0 %v1135
      %1442 = vmatprep.subr.bf16.mxu0 0
      %1443 = vmatpush2.bf16.msra.mxu0 %v1150
      %1444 = vmatprep.subr.bf16.mxu0 0
      %1445 = vmatpush2.bf16.msra.mxu0 %v1149
      %1446 = vmatprep.subr.bf16.mxu0 0
      %1447 = vmatpush2.bf16.msra.mxu0 %v1148
      %1448 = vmatprep.subr.bf16.mxu0 0
      %1449 = vmatpush2.bf16.msra.mxu0 %v1147
      %1450 = vmatprep.subr.bf16.mxu0 0
      %1451 = vmatpush2.bf16.msra.mxu0 %v1146
      %1452 = vmatprep.subr.bf16.mxu0 0
      %1453 = vmatpush2.bf16.msra.mxu0 %v1145
      %1454 = vmatprep.subr.bf16.mxu0 0
      %1455 = vmatpush2.bf16.msra.mxu0 %v1144
      %1456 = vmatprep.subr.bf16.mxu0 0
      %1457 = vmatpush2.bf16.msra.mxu0 %v1143
      %1458 = vmatprep.mubr.bf16.mxu0 %v752
      %1459 = vmatmul.mubr.bf16.gmra.mxu0 %v751
      %v1460 = vpop.f32.mrf.mxu0
      %v1461 = vadd.f32 %v1396, %v1460
      %v1462 = vpop.f32.mrf.mxu0
      %v1463 = vpop.f32.mrf.mxu0
      %v1464 = vadd.f32 %v1399, %v1463
      %v1465 = vpop.f32.mrf.mxu0
      %1466 = vmatprep.mubr.bf16.mxu0 %v758
      %1467 = vmatmul.mubr.bf16.gmra.mxu0 %v757
      %v1468 = vpop.f32.mrf.mxu0
      %v1469 = vadd.f32 %v1404, %v1468
      %v1470 = vpop.f32.mrf.mxu0
      %v1471 = vpop.f32.mrf.mxu0
      %v1472 = vadd.f32 %v1407, %v1471
      %v1473 = vpop.f32.mrf.mxu0
      %1474 = vmatprep.mubr.bf16.mxu0 %v764
      %1475 = vmatmul.mubr.bf16.gmra.mxu0 %v763
      %v1476 = vpop.f32.mrf.mxu0
      %v1477 = vadd.f32 %v1412, %v1476
      %v1478 = vpop.f32.mrf.mxu0
      %v1479 = vpop.f32.mrf.mxu0
      %v1480 = vadd.f32 %v1415, %v1479
      %v1481 = vpop.f32.mrf.mxu0
      %1482 = vmatprep.mubr.bf16.mxu0 %v770
      %1483 = vmatmul.mubr.bf16.gmra.mxu0 %v769
      %v1484 = vpop.f32.mrf.mxu0
      %v1485 = vadd.f32 %v1420, %v1484
      %v1486 = vpop.f32.mrf.mxu0
      %v1487 = vpop.f32.mrf.mxu0
      %v1488 = vadd.f32 %v1423, %v1487
      %v1489 = vpop.f32.mrf.mxu0
      %1490 = vdwg.mxu0
      %1491 = vmatprep.subr.bf16.mxu0 0
      %1492 = vmatpush1.bf16.msra.mxu0 %v1158
      %1493 = vmatprep.subr.bf16.mxu0 0
      %1494 = vmatpush1.bf16.msra.mxu0 %v1157
      %1495 = vmatprep.subr.bf16.mxu0 0
      %1496 = vmatpush1.bf16.msra.mxu0 %v1156
      %1497 = vmatprep.subr.bf16.mxu0 0
      %1498 = vmatpush1.bf16.msra.mxu0 %v1155
      %1499 = vmatprep.subr.bf16.mxu0 0
      %1500 = vmatpush1.bf16.msra.mxu0 %v1154
      %1501 = vmatprep.subr.bf16.mxu0 0
      %1502 = vmatpush1.bf16.msra.mxu0 %v1153
      %1503 = vmatprep.subr.bf16.mxu0 0
      %1504 = vmatpush1.bf16.msra.mxu0 %v1152
      %1505 = vmatprep.subr.bf16.mxu0 0
      %1506 = vmatpush1.bf16.msra.mxu0 %v1151
      %1507 = vmatprep.subr.bf16.mxu0 0
      %1508 = vmatpush2.bf16.msra.mxu0 0
      %1509 = vmatprep.subr.bf16.mxu0 0
      %1510 = vmatpush2.bf16.msra.mxu0 0
      %1511 = vmatprep.subr.bf16.mxu0 0
      %1512 = vmatpush2.bf16.msra.mxu0 0
      %1513 = vmatprep.subr.bf16.mxu0 0
      %1514 = vmatpush2.bf16.msra.mxu0 0
      %1515 = vmatprep.subr.bf16.mxu0 0
      %1516 = vmatpush2.bf16.msra.mxu0 0
      %1517 = vmatprep.subr.bf16.mxu0 0
      %1518 = vmatpush2.bf16.msra.mxu0 0
      %1519 = vmatprep.subr.bf16.mxu0 0
      %1520 = vmatpush2.bf16.msra.mxu0 0
      %1521 = vmatprep.subr.bf16.mxu0 0
      %1522 = vmatpush2.bf16.msra.mxu0 0
      %1523 = vmatprep.mubr.bf16.mxu0 0
      %1524 = vmatmul.mubr.bf16.gmra.mxu0 %v753
      %v1525 = vpop.f32.mrf.mxu0
      %v1526 = vadd.f32 %v1461, %v1525
      %v1527 = vpop.f32.mrf.mxu0
      %v1528 = vpop.f32.mrf.mxu0
      %v1529 = vadd.f32 %v1464, %v1528
      %v1530 = vpop.f32.mrf.mxu0
      %1531 = vmatprep.mubr.bf16.mxu0 0
      %1532 = vmatmul.mubr.bf16.gmra.mxu0 %v759
      %v1533 = vpop.f32.mrf.mxu0
      %v1534 = vadd.f32 %v1469, %v1533
      %v1535 = vpop.f32.mrf.mxu0
      %v1536 = vpop.f32.mrf.mxu0
      %v1537 = vadd.f32 %v1472, %v1536
      %v1538 = vpop.f32.mrf.mxu0
      %1539 = vmatprep.mubr.bf16.mxu0 0
      %1540 = vmatmul.mubr.bf16.gmra.mxu0 %v765
      %v1541 = vpop.f32.mrf.mxu0
      %v1542 = vadd.f32 %v1477, %v1541
      %v1543 = vpop.f32.mrf.mxu0
      %v1544 = vpop.f32.mrf.mxu0
      %v1545 = vadd.f32 %v1480, %v1544
      %v1546 = vpop.f32.mrf.mxu0
      %1547 = vmatprep.mubr.bf16.mxu0 0
      %1548 = vmatmul.mubr.bf16.gmra.mxu0 %v771
      %v1549 = vpop.f32.mrf.mxu0
      %v1550 = vadd.f32 %v1485, %v1549
      %v1551 = vpop.f32.mrf.mxu0
      %v1552 = vpop.f32.mrf.mxu0
      %v1553 = vadd.f32 %v1488, %v1552
      %v1554 = vpop.f32.mrf.mxu0
      %1555 = vdwg.mxu0
      %v1556 = vld [vmem:[%s307] sm:$0x1]
      %v1558 = vlaneseq
      %v1559 = vshrl.u32 %v1558, 7
      %v1560 = vsub.s32 0, %v1559
      %v1561 = vrot.slane %v1556, %v1560
      %v1563 = vadd.f32 %v1526, %v1561
      %v1564 = vadd.f32 %v1529, %v1561
      %v1565 = vadd.f32 %v1534, %v1561
      %v1566 = vadd.f32 %v1537, %v1561
      %v1567 = vadd.f32 %v1542, %v1561
      %v1568 = vadd.f32 %v1545, %v1561
      %v1569 = vadd.f32 %v1550, %v1561
      %v1570 = vadd.f32 %v1553, %v1561
      %v1571 = vmax.f32 %v1563, 0.0
      %v1572 = vmax.f32 %v1564, 0.0
      %v1573 = vmax.f32 %v1565, 0.0
      %v1574 = vmax.f32 %v1566, 0.0
      %v1575 = vmax.f32 %v1567, 0.0
      %v1576 = vmax.f32 %v1568, 0.0
      %v1577 = vmax.f32 %v1569, 0.0
      %v1578 = vmax.f32 %v1570, 0.0
      %v1579 = vpack.c.bf16 %v1571, %v1571
      %v1580 = vpack.c.bf16 %v1572, %v1572
      %v1581 = vpack.c.bf16 %v1573, %v1573
      %v1582 = vpack.c.bf16 %v1574, %v1574
      %v1583 = vpack.c.bf16 %v1575, %v1575
      %v1584 = vpack.c.bf16 %v1576, %v1576
      %v1585 = vpack.c.bf16 %v1577, %v1577
      %v1586 = vpack.c.bf16 %v1578, %v1578
      %1587 = vst [vmem:[%s315] sm:$0xf] %v1579
      %1588 = vst [vmem:[%s315 + $0x4] sm:$0xf] %v1580
      %1589 = vst [vmem:[%s315 + $0x8] sm:$0xf] %v1581
      %1590 = vst [vmem:[%s315 + $0xc] sm:$0xf] %v1582
      %1591 = vst [vmem:[%s315 + $0x10] sm:$0xf] %v1583
      %1592 = vst [vmem:[%s315 + $0x14] sm:$0xf] %v1584
      %1593 = vst [vmem:[%s315 + $0x18] sm:$0xf] %v1585
      %1594 = vst [vmem:[%s315 + $0x1c] sm:$0xf] %v1586
      %p1595 = scmp.lt.s32.totalorder %s21, 1
      %s1596 = scalar_select %p1595, %s21, 1
      %p1597 = scmp.lt.s32.totalorder %s20, 0
      %s1598 = scalar_select %p1597, %s20, 0
      %s1599 = smul.addr %s1596, 8
      %s1600 = sadd.s32 %s1598, %s1599
      %s1601 = smul.addr %s1600, 4
      %s1602 = scalar_lea.vmem %s5, %s1601
      // Predicated region
      $region41: #{residual_block_forward.3} parent=39 // pred_check
        %p1603 = pneg %p178
      $region42: #{residual_block_forward.3} parent=39 // pred_check_branch
        %1605 = sbr.rel (%p1603) target = $region44
      $region43: #{residual_block_forward.3} parent=39 // pred_region
        _
      $region44: #{residual_block_forward.3} parent=39 // pred_fallthru
        _
    $region40: #{residual_block_forward.3} parent=5 // pred_fallthru
      _
    %p1606 = scmp.le.s32.totalorder 2, %s11
    // Predicated region
    $region45: #{residual_block_forward.3} parent=5 // pred_check
      %p1607 = pneg %p1606
    $region46: #{residual_block_forward.3} parent=5 // pred_check_branch
      %1609 = sbr.rel (%p1607) target = $region48
    $region47: #{residual_block_forward.3} parent=5 // pred_region
      %s1610 = ssub.s32 %s11, 2
      // Predicated region
      $region49: #{residual_block_forward.3} parent=47 // pred_check
        %p1611 = pneg %p184
      $region50: #{residual_block_forward.3} parent=47 // pred_check_branch
        %1613 = sbr.rel (%p1611) target = $region52
      $region51: #{residual_block_forward.3} parent=47 // pred_region
        %p1614 = scmp.lt.s32.totalorder %s23, 1
        %s1615 = scalar_select %p1614, %s23, 1
        %p1616 = scmp.lt.s32.totalorder %s22, 0
        %s1617 = scalar_select %p1616, %s22, 0
        %s1618 = smul.addr %s1615, 8
        %s1619 = sadd.s32 %s1617, %s1618
        %s1620 = smul.addr %s1619, 4
        %s1621 = scalar_lea.vmem %s5, %s1620
      $region52: #{residual_block_forward.3} parent=47 // pred_fallthru
        _
    $region48: #{residual_block_forward.3} parent=5 // pred_fallthru
      _
  $region6: #{residual_block_forward.3} parent=0 // loop_footer
    %s15 = sadd.s32 1, %s11
  $region7: #{residual_block_forward.3} parent=0 // loop_footer_branch
    %10 = sbr.rel target = $region3
  $region8: #{residual_block_forward.3} parent=0 // loop_exit
    _

</llo_original>
